<compile_context>
chip_gen: v7x
topology: tpu7x:2x2x1
jax: 0.10.0
libtpu: 0.0.40
codegen_flags: <defaults>
</compile_context>

<pallas_src>
import functools

import jax
import jax.numpy as jnp
from jax.experimental import pallas as pl
from jax.experimental.pallas import tpu as pltpu


# ----------------------------- Pallas kernels ------------------------------ #

def _conv_accum(planes_ref, w_ref, taps, p_flat):
    """sum_t  W_t @ planes[plane_t, :, start_t : start_t + p_flat]  -> (Cout, P)."""
    acc = None
    for t, (plane, start) in enumerate(taps):
        rhs = planes_ref[plane, :, pl.ds(start, p_flat)]         # (Cin, P)
        y = jnp.dot(w_ref[t], rhs, preferred_element_type=jnp.float32)
        acc = y if acc is None else acc + y
    return acc


def _conv_bias_kernel(planes_ref, w_ref, b_ref, o_ref, *, taps, p_flat):
    """out = conv(x) + b   (activate=False path)."""
    acc = _conv_accum(planes_ref, w_ref, taps, p_flat)
    o_ref[...] = (acc + b_ref[...]).astype(o_ref.dtype)


def _conv_act_norm_kernel(planes_ref, w_ref, b_ref, mask_ref, gw_ref, gb_ref,
                          o_ref, *, taps, p_flat, negative_slope, eps, inv_n):
    """out = LayerNorm(LeakyReLU(conv(x) + b)) * gamma + beta.

    mask marks the valid output columns (1.0) vs. padded garbage columns (0.0)
    so the whole-sample LayerNorm statistics only see real pixels.
    """
    acc = _conv_accum(planes_ref, w_ref, taps, p_flat)
    y = acc + b_ref[...]                                        # (Cout, P)
    # LeakyReLU(0.2)
    y = jnp.where(y >= 0.0, y, y * negative_slope)
    m = mask_ref[...]                                           # (1, P)
    # _LayerNorm: single mean/var over the whole (C, H, W) sample, eps=1e-12.
    s = jnp.sum(jnp.sum(y * m, axis=1, keepdims=True), axis=0, keepdims=True)
    mean = s * inv_n                                            # (1, 1)
    yc = y - mean
    ss = jnp.sum(jnp.sum(yc * yc * m, axis=1, keepdims=True), axis=0, keepdims=True)
    var = ss * inv_n                                            # (1, 1)
    y = yc * jax.lax.rsqrt(var + eps)
    # Per-channel affine (gamma, beta broadcast over spatial lanes).
    y = y * gw_ref[...] + gb_ref[...]                           # (Cout, 1) broadcast
    o_ref[...] = y.astype(o_ref.dtype)


# ------------------------------- wrappers ----------------------------------- #

def _same_pad_amounts(h, stride):
    # _SamePad semantics: F.pad(x, (0,1,0,1)) if stride==2 and H even else (1,1,1,1)
    if stride == 2 and h % 2 == 0:
        return (0, 1, 0, 1)      # (top, bottom, left, right)
    return (1, 1, 1, 1)


def _round_up(x, m):
    return (x + m - 1) // m * m


def _build_planes(xp, stride, h_out, w_out):
    """Phase-decompose + flatten the padded NCHW image for in-kernel tap slicing.

    Returns (planes, taps, wq, p_flat):
      planes : (N, stride*stride, Cin, L) flat phase images; row stride = wq.
      taps   : 9 static (plane_index, flat_start) pairs, one per (kh, kw).
      p_flat : h_out * wq, length of each tap's contiguous chunk (multiple of 128).
    Columns j >= w_out of each wq-wide row group are padding/garbage.
    """
    n, cin, hp, wp = xp.shape
    s = stride
    rows_needed = max(kh // s for kh in range(3)) + h_out
    cols_needed = max(kw // s for kw in range(3)) + w_out
    wq = cols_needed
    while (h_out * wq) % 128 != 0:       # lane-dense output chunks
        wq += 1
    p_flat = h_out * wq
    max_start = max((kh // s) * wq + (kw // s) for kh in range(3) for kw in range(3))
    l_flat = _round_up(max_start + p_flat, 128)

    planes = []
    for a in range(s):
        for b in range(s):
            ph = xp[:, :, a::s, b::s]                            # (N, Cin, ha, wb)
            ph = jnp.pad(ph, ((0, 0), (0, 0),
                              (0, rows_needed - ph.shape[2]),
                              (0, wq - ph.shape[3])))
            planes.append(ph.reshape(n, cin, rows_needed * wq))
    planes = jnp.stack(planes, axis=1)                           # (N, s*s, Cin, rows*wq)
    pad_l = l_flat - planes.shape[-1]
    if pad_l > 0:
        planes = jnp.pad(planes, ((0, 0), (0, 0), (0, 0), (0, pad_l)))

    taps = tuple(((kh % s) * s + (kw % s), (kh // s) * wq + (kw // s))
                 for kh in range(3) for kw in range(3))
    return planes, taps, wq, p_flat


def conv2d_block(x, weight, bias, *, stride, activate,
                 ln_weight=None, ln_bias=None, eps=1e-12):
    """Pallas equivalent of `_conv2d(...)` applied to NCHW `x` (eval mode)."""
    n, cin, h, w = x.shape
    cout = weight.shape[0]
    assert weight.shape == (cout, cin, 3, 3)

    top, bottom, left, right = _same_pad_amounts(h, stride)
    xp = jnp.pad(x, ((0, 0), (0, 0), (top, bottom), (left, right)))
    hp, wp = xp.shape[2], xp.shape[3]
    h_out = (hp - 3) // stride + 1
    w_out = (wp - 3) // stride + 1

    planes, taps, wq, p_flat = _build_planes(xp, stride, h_out, w_out)
    nplanes, l_flat = planes.shape[1], planes.shape[3]

    # Per-tap weight matrices, same (kh, kw) order as `taps`.
    w_taps = jnp.stack([weight[:, :, kh, kw]
                        for kh in range(3) for kw in range(3)], axis=0)  # (9,Cout,Cin)
    b_col = bias.reshape(cout, 1)

    per_sample4d = lambda i: (i, 0, 0, 0)
    per_sample3d = lambda i: (i, 0, 0)
    full3d = lambda i: (0, 0, 0)
    full2d = lambda i: (0, 0)

    if activate:
        col = jnp.arange(p_flat, dtype=jnp.int32) % wq
        mask = (col < w_out).astype(jnp.float32).reshape(1, p_flat)
        kernel = functools.partial(
            _conv_act_norm_kernel, taps=taps, p_flat=p_flat,
            negative_slope=0.2, eps=eps,
            inv_n=1.0 / float(cout * h_out * w_out))
        operands = (planes, w_taps, b_col, mask,
                    ln_weight.reshape(cout, 1), ln_bias.reshape(cout, 1))
        in_specs = [
            pl.BlockSpec((None, nplanes, cin, l_flat), per_sample4d),
            pl.BlockSpec((9, cout, cin), full3d),
            pl.BlockSpec((cout, 1), full2d),
            pl.BlockSpec((1, p_flat), full2d),
            pl.BlockSpec((cout, 1), full2d),
            pl.BlockSpec((cout, 1), full2d),
        ]
    else:
        kernel = functools.partial(_conv_bias_kernel, taps=taps, p_flat=p_flat)
        operands = (planes, w_taps, b_col)
        in_specs = [
            pl.BlockSpec((None, nplanes, cin, l_flat), per_sample4d),
            pl.BlockSpec((9, cout, cin), full3d),
            pl.BlockSpec((cout, 1), full2d),
        ]

    out_flat = pl.pallas_call(
        kernel,
        out_shape=jax.ShapeDtypeStruct((n, cout, p_flat), x.dtype),
        grid_spec=pltpu.PrefetchScalarGridSpec(
            num_scalar_prefetch=0,
            grid=(n,),
            in_specs=in_specs,
            out_specs=pl.BlockSpec((None, cout, p_flat), per_sample3d),
        ),
        compiler_params=pltpu.CompilerParams(
            dimension_semantics=("parallel",)),
    )(*operands)

    # Drop the padded garbage columns (cheap XLA slice) and restore NCHW.
    return out_flat.reshape(n, cout, h_out, wq)[:, :, :, :w_out]


# --------------------------- pure-JAX reference ----------------------------- #

def _conv2d_ref(x, weight, bias, *, stride, activate,
                ln_weight=None, ln_bias=None, eps=1e-12):
    top, bottom, left, right = _same_pad_amounts(x.shape[2], stride)
    xp = jnp.pad(x, ((0, 0), (0, 0), (top, bottom), (left, right)))
    y = jax.lax.conv_general_dilated(
        xp, weight, window_strides=(stride, stride), padding="VALID",
        dimension_numbers=("NCHW", "OIHW", "NCHW"),
        precision=jax.lax.Precision.HIGHEST)
    y = y + bias[None, :, None, None]
    if activate:
        y = jnp.where(y >= 0.0, y, 0.2 * y)
        mean = jnp.mean(y, axis=(1, 2, 3), keepdims=True)
        var = jnp.mean((y - mean) ** 2, axis=(1, 2, 3), keepdims=True)
        y = (y - mean) * jax.lax.rsqrt(var + eps)
        y = y * ln_weight[None, :, None, None] + ln_bias[None, :, None, None]
    return y


if __name__ == "__main__":
    key = jax.random.PRNGKey(0)
    keys = jax.random.split(key, 8)

    N = 2
    pre_channels = 4
    in_channels = 4
    out_channels = 8
    out_size = 16

    # _EncoderBlock_3 inputs: pre_input at 2x resolution, x at out_size.
    pre_input = jax.random.normal(
        keys[0], (N, pre_channels, 2 * out_size, 2 * out_size), jnp.float32)
    x = jax.random.normal(
        keys[1], (N, in_channels, out_size, out_size), jnp.float32)

    # pre_conv = _conv2d(pre_channels, pre_channels, k=3, stride=2, activate=False)
    w_pre = 0.1 * jax.random.normal(
        keys[2], (pre_channels, pre_channels, 3, 3), jnp.float32)
    b_pre = 0.1 * jax.random.normal(keys[3], (pre_channels,), jnp.float32)

    # conv0 = _conv2d(in+pre channels, out_channels, k=3, stride=1, out_size=out_size)
    w0 = 0.1 * jax.random.normal(
        keys[4], (out_channels, in_channels + pre_channels, 3, 3), jnp.float32)
    b0 = 0.1 * jax.random.normal(keys[5], (out_channels,), jnp.float32)
    ln_w0 = 1.0 + 0.1 * jax.random.normal(keys[6], (out_channels,), jnp.float32)
    ln_b0 = 0.1 * jax.random.normal(keys[7], (out_channels,), jnp.float32)

    # --- Pallas forward (the part of _EncoderBlock_3.forward expressible here) ---
    pre_out = conv2d_block(pre_input, w_pre, b_pre, stride=2, activate=False)
    out0 = conv2d_block(jnp.concatenate([x, pre_out], axis=1), w0, b0,
                        stride=1, activate=True, ln_weight=ln_w0, ln_bias=ln_b0)
    jax.block_until_ready(out0)

    assert pre_out.shape == (N, pre_channels, out_size, out_size), pre_out.shape
    assert out0.shape == (N, out_channels, out_size, out_size), out0.shape

    # --- verify against a pure-JAX reference (tolerance covers MXU precision) ---
    pre_ref = _conv2d_ref(pre_input, w_pre, b_pre, stride=2, activate=False)
    out0_ref = _conv2d_ref(jnp.concatenate([x, pre_ref], axis=1), w0, b0,
                           stride=1, activate=True,
                           ln_weight=ln_w0, ln_bias=ln_b0)
    assert jnp.allclose(pre_out, pre_ref, rtol=2e-2, atol=2e-2)
    assert jnp.allclose(out0, out0_ref, rtol=2e-2, atol=2e-2)
    assert not jnp.any(jnp.isnan(out0))

    # TODO(synk): the remaining layers (conv1, conv3, ... = PyramidSplitAttention,
    # and the final stride-2 conv over the dense concat of their outputs) need
    # the PyramidSplitAttention definition, which is not in the provided spec.
    print("KERNEL_OK")
</pallas_src>

<mosaic_0001>
module attributes {stable_mosaic.version = 11 : i64} {
  func.func @_conv_bias_kernel(%arg0: i32, %arg1: memref<1x4x4x512xf32, #tpu.memory_space<vmem>>, %arg2: memref<9x4x4xf32, #tpu.memory_space<vmem>>, %arg3: memref<4x1xf32, #tpu.memory_space<vmem>>, %arg4: memref<1x4x384xf32, #tpu.memory_space<vmem>>) attributes {dimension_semantics = [#tpu.dimension_semantics<parallel>], iteration_bounds = array<i64: 2>, scalar_prefetch = 0 : i64, scratch_operands = 0 : i64, tpu.core_type = #tpu.core_type<tc>, window_params = [{transform_indices = @transform_0, window_bounds = array<i64: 1, 4, 4, 512>}, {pipeline_mode = #tpu.pipeline_mode<synchronous>, transform_indices = @transform_1, window_bounds = array<i64: 9, 4, 4>}, {pipeline_mode = #tpu.pipeline_mode<synchronous>, transform_indices = @transform_2, window_bounds = array<i64: 4, 1>}, {transform_indices = @transform_3, window_bounds = array<i64: 1, 4, 384>}]} {
    %c0 = arith.constant 0 : index
    %c0_0 = arith.constant 0 : index
    %c0_1 = arith.constant 0 : index
    %c0_2 = arith.constant 0 : index
    %0 = vector.load %arg1[%c0, %c0_0, %c0_1, %c0_2] : memref<1x4x4x512xf32, #tpu.memory_space<vmem>>, vector<1x1x4x384xf32>
    %1 = vector.shape_cast %0 : vector<1x1x4x384xf32> to vector<4x384xf32>
    %c0_3 = arith.constant 0 : index
    %c0_4 = arith.constant 0 : index
    %c0_5 = arith.constant 0 : index
    %2 = vector.load %arg2[%c0_3, %c0_4, %c0_5] : memref<9x4x4xf32, #tpu.memory_space<vmem>>, vector<1x4x4xf32>
    %3 = vector.shape_cast %2 : vector<1x4x4xf32> to vector<4x4xf32>
    %cst = arith.constant dense<0.000000e+00> : vector<4x384xf32>
    %4 = tpu.matmul %3, %1, %cst {dimension_numbers = #tpu.dot_dimension_numbers<[1], [0], [0], [1], [0, 0, 1, 1], [], []>} : vector<4x4xf32>, vector<4x384xf32>, vector<4x384xf32> -> vector<4x384xf32>
    %c0_6 = arith.constant 0 : index
    %c1 = arith.constant 1 : index
    %c0_7 = arith.constant 0 : index
    %c0_8 = arith.constant 0 : index
    %5 = vector.load %arg1[%c0_6, %c1, %c0_7, %c0_8] : memref<1x4x4x512xf32, #tpu.memory_space<vmem>>, vector<1x1x4x384xf32>
    %6 = vector.shape_cast %5 : vector<1x1x4x384xf32> to vector<4x384xf32>
    %c1_9 = arith.constant 1 : index
    %c0_10 = arith.constant 0 : index
    %c0_11 = arith.constant 0 : index
    %7 = vector.load %arg2[%c1_9, %c0_10, %c0_11] : memref<9x4x4xf32, #tpu.memory_space<vmem>>, vector<1x4x4xf32>
    %8 = vector.shape_cast %7 : vector<1x4x4xf32> to vector<4x4xf32>
    %cst_12 = arith.constant dense<0.000000e+00> : vector<4x384xf32>
    %9 = tpu.matmul %8, %6, %cst_12 {dimension_numbers = #tpu.dot_dimension_numbers<[1], [0], [0], [1], [0, 0, 1, 1], [], []>} : vector<4x4xf32>, vector<4x384xf32>, vector<4x384xf32> -> vector<4x384xf32>
    %10 = arith.addf %4, %9 : vector<4x384xf32>
    %c0_13 = arith.constant 0 : index
    %c0_14 = arith.constant 0 : index
    %c0_15 = arith.constant 0 : index
    %c1_16 = arith.constant 1 : index
    %11 = vector.load %arg1[%c0_13, %c0_14, %c0_15, %c1_16] : memref<1x4x4x512xf32, #tpu.memory_space<vmem>>, vector<1x1x4x384xf32>
    %12 = vector.shape_cast %11 : vector<1x1x4x384xf32> to vector<4x384xf32>
    %c2 = arith.constant 2 : index
    %c0_17 = arith.constant 0 : index
    %c0_18 = arith.constant 0 : index
    %13 = vector.load %arg2[%c2, %c0_17, %c0_18] : memref<9x4x4xf32, #tpu.memory_space<vmem>>, vector<1x4x4xf32>
    %14 = vector.shape_cast %13 : vector<1x4x4xf32> to vector<4x4xf32>
    %cst_19 = arith.constant dense<0.000000e+00> : vector<4x384xf32>
    %15 = tpu.matmul %14, %12, %cst_19 {dimension_numbers = #tpu.dot_dimension_numbers<[1], [0], [0], [1], [0, 0, 1, 1], [], []>} : vector<4x4xf32>, vector<4x384xf32>, vector<4x384xf32> -> vector<4x384xf32>
    %16 = arith.addf %10, %15 : vector<4x384xf32>
    %c0_20 = arith.constant 0 : index
    %c2_21 = arith.constant 2 : index
    %c0_22 = arith.constant 0 : index
    %c0_23 = arith.constant 0 : index
    %17 = vector.load %arg1[%c0_20, %c2_21, %c0_22, %c0_23] : memref<1x4x4x512xf32, #tpu.memory_space<vmem>>, vector<1x1x4x384xf32>
    %18 = vector.shape_cast %17 : vector<1x1x4x384xf32> to vector<4x384xf32>
    %c3 = arith.constant 3 : index
    %c0_24 = arith.constant 0 : index
    %c0_25 = arith.constant 0 : index
    %19 = vector.load %arg2[%c3, %c0_24, %c0_25] : memref<9x4x4xf32, #tpu.memory_space<vmem>>, vector<1x4x4xf32>
    %20 = vector.shape_cast %19 : vector<1x4x4xf32> to vector<4x4xf32>
    %cst_26 = arith.constant dense<0.000000e+00> : vector<4x384xf32>
    %21 = tpu.matmul %20, %18, %cst_26 {dimension_numbers = #tpu.dot_dimension_numbers<[1], [0], [0], [1], [0, 0, 1, 1], [], []>} : vector<4x4xf32>, vector<4x384xf32>, vector<4x384xf32> -> vector<4x384xf32>
    %22 = arith.addf %16, %21 : vector<4x384xf32>
    %c0_27 = arith.constant 0 : index
    %c3_28 = arith.constant 3 : index
    %c0_29 = arith.constant 0 : index
    %c0_30 = arith.constant 0 : index
    %23 = vector.load %arg1[%c0_27, %c3_28, %c0_29, %c0_30] : memref<1x4x4x512xf32, #tpu.memory_space<vmem>>, vector<1x1x4x384xf32>
    %24 = vector.shape_cast %23 : vector<1x1x4x384xf32> to vector<4x384xf32>
    %c4 = arith.constant 4 : index
    %c0_31 = arith.constant 0 : index
    %c0_32 = arith.constant 0 : index
    %25 = vector.load %arg2[%c4, %c0_31, %c0_32] : memref<9x4x4xf32, #tpu.memory_space<vmem>>, vector<1x4x4xf32>
    %26 = vector.shape_cast %25 : vector<1x4x4xf32> to vector<4x4xf32>
    %cst_33 = arith.constant dense<0.000000e+00> : vector<4x384xf32>
    %27 = tpu.matmul %26, %24, %cst_33 {dimension_numbers = #tpu.dot_dimension_numbers<[1], [0], [0], [1], [0, 0, 1, 1], [], []>} : vector<4x4xf32>, vector<4x384xf32>, vector<4x384xf32> -> vector<4x384xf32>
    %28 = arith.addf %22, %27 : vector<4x384xf32>
    %c0_34 = arith.constant 0 : index
    %c2_35 = arith.constant 2 : index
    %c0_36 = arith.constant 0 : index
    %c1_37 = arith.constant 1 : index
    %29 = vector.load %arg1[%c0_34, %c2_35, %c0_36, %c1_37] : memref<1x4x4x512xf32, #tpu.memory_space<vmem>>, vector<1x1x4x384xf32>
    %30 = vector.shape_cast %29 : vector<1x1x4x384xf32> to vector<4x384xf32>
    %c5 = arith.constant 5 : index
    %c0_38 = arith.constant 0 : index
    %c0_39 = arith.constant 0 : index
    %31 = vector.load %arg2[%c5, %c0_38, %c0_39] : memref<9x4x4xf32, #tpu.memory_space<vmem>>, vector<1x4x4xf32>
    %32 = vector.shape_cast %31 : vector<1x4x4xf32> to vector<4x4xf32>
    %cst_40 = arith.constant dense<0.000000e+00> : vector<4x384xf32>
    %33 = tpu.matmul %32, %30, %cst_40 {dimension_numbers = #tpu.dot_dimension_numbers<[1], [0], [0], [1], [0, 0, 1, 1], [], []>} : vector<4x4xf32>, vector<4x384xf32>, vector<4x384xf32> -> vector<4x384xf32>
    %34 = arith.addf %28, %33 : vector<4x384xf32>
    %c0_41 = arith.constant 0 : index
    %c0_42 = arith.constant 0 : index
    %c0_43 = arith.constant 0 : index
    %c24 = arith.constant 24 : index
    %35 = vector.load %arg1[%c0_41, %c0_42, %c0_43, %c24] : memref<1x4x4x512xf32, #tpu.memory_space<vmem>>, vector<1x1x4x384xf32>
    %36 = vector.shape_cast %35 : vector<1x1x4x384xf32> to vector<4x384xf32>
    %c6 = arith.constant 6 : index
    %c0_44 = arith.constant 0 : index
    %c0_45 = arith.constant 0 : index
    %37 = vector.load %arg2[%c6, %c0_44, %c0_45] : memref<9x4x4xf32, #tpu.memory_space<vmem>>, vector<1x4x4xf32>
    %38 = vector.shape_cast %37 : vector<1x4x4xf32> to vector<4x4xf32>
    %cst_46 = arith.constant dense<0.000000e+00> : vector<4x384xf32>
    %39 = tpu.matmul %38, %36, %cst_46 {dimension_numbers = #tpu.dot_dimension_numbers<[1], [0], [0], [1], [0, 0, 1, 1], [], []>} : vector<4x4xf32>, vector<4x384xf32>, vector<4x384xf32> -> vector<4x384xf32>
    %40 = arith.addf %34, %39 : vector<4x384xf32>
    %c0_47 = arith.constant 0 : index
    %c1_48 = arith.constant 1 : index
    %c0_49 = arith.constant 0 : index
    %c24_50 = arith.constant 24 : index
    %41 = vector.load %arg1[%c0_47, %c1_48, %c0_49, %c24_50] : memref<1x4x4x512xf32, #tpu.memory_space<vmem>>, vector<1x1x4x384xf32>
    %42 = vector.shape_cast %41 : vector<1x1x4x384xf32> to vector<4x384xf32>
    %c7 = arith.constant 7 : index
    %c0_51 = arith.constant 0 : index
    %c0_52 = arith.constant 0 : index
    %43 = vector.load %arg2[%c7, %c0_51, %c0_52] : memref<9x4x4xf32, #tpu.memory_space<vmem>>, vector<1x4x4xf32>
    %44 = vector.shape_cast %43 : vector<1x4x4xf32> to vector<4x4xf32>
    %cst_53 = arith.constant dense<0.000000e+00> : vector<4x384xf32>
    %45 = tpu.matmul %44, %42, %cst_53 {dimension_numbers = #tpu.dot_dimension_numbers<[1], [0], [0], [1], [0, 0, 1, 1], [], []>} : vector<4x4xf32>, vector<4x384xf32>, vector<4x384xf32> -> vector<4x384xf32>
    %46 = arith.addf %40, %45 : vector<4x384xf32>
    %c0_54 = arith.constant 0 : index
    %c0_55 = arith.constant 0 : index
    %c0_56 = arith.constant 0 : index
    %c25 = arith.constant 25 : index
    %47 = vector.load %arg1[%c0_54, %c0_55, %c0_56, %c25] : memref<1x4x4x512xf32, #tpu.memory_space<vmem>>, vector<1x1x4x384xf32>
    %48 = vector.shape_cast %47 : vector<1x1x4x384xf32> to vector<4x384xf32>
    %c8 = arith.constant 8 : index
    %c0_57 = arith.constant 0 : index
    %c0_58 = arith.constant 0 : index
    %49 = vector.load %arg2[%c8, %c0_57, %c0_58] : memref<9x4x4xf32, #tpu.memory_space<vmem>>, vector<1x4x4xf32>
    %50 = vector.shape_cast %49 : vector<1x4x4xf32> to vector<4x4xf32>
    %cst_59 = arith.constant dense<0.000000e+00> : vector<4x384xf32>
    %51 = tpu.matmul %50, %48, %cst_59 {dimension_numbers = #tpu.dot_dimension_numbers<[1], [0], [0], [1], [0, 0, 1, 1], [], []>} : vector<4x4xf32>, vector<4x384xf32>, vector<4x384xf32> -> vector<4x384xf32>
    %52 = arith.addf %46, %51 : vector<4x384xf32>
    %c0_60 = arith.constant 0 : index
    %c0_61 = arith.constant 0 : index
    %53 = vector.load %arg3[%c0_60, %c0_61] : memref<4x1xf32, #tpu.memory_space<vmem>>, vector<4x1xf32>
    %54 = vector.broadcast %53 : vector<4x1xf32> to vector<4x384xf32>
    %55 = arith.addf %52, %54 : vector<4x384xf32>
    %c0_62 = arith.constant 0 : index
    %c0_63 = arith.constant 0 : index
    %c0_64 = arith.constant 0 : index
    %56 = vector.load %arg4[%c0_62, %c0_63, %c0_64] : memref<1x4x384xf32, #tpu.memory_space<vmem>>, vector<1x4x384xf32>
    %57 = vector.shape_cast %56 : vector<1x4x384xf32> to vector<4x384xf32>
    %58 = vector.shape_cast %55 : vector<4x384xf32> to vector<1x4x384xf32>
    tpu.vector_store %arg4[%c0_62, %c0_63, %c0_64], %58 {strides = array<i32>} : memref<1x4x384xf32, #tpu.memory_space<vmem>>, vector<1x4x384xf32>,
    return
  }
  func.func @transform_0(%arg0: i32) -> (i32, i32, i32, i32) {
    %c0_i32 = arith.constant 0 : i32
    %c0_i32_0 = arith.constant 0 : i32
    %c0_i32_1 = arith.constant 0 : i32
    %c0_i32_2 = arith.constant 0 : i32
    return %arg0, %c0_i32, %c0_i32_0, %c0_i32_1 : i32, i32, i32, i32
  }
  func.func @transform_1(%arg0: i32) -> (i32, i32, i32) {
    %c0_i32 = arith.constant 0 : i32
    %c0_i32_0 = arith.constant 0 : i32
    %c0_i32_1 = arith.constant 0 : i32
    %c0_i32_2 = arith.constant 0 : i32
    return %c0_i32, %c0_i32_0, %c0_i32_1 : i32, i32, i32
  }
  func.func @transform_2(%arg0: i32) -> (i32, i32) {
    %c0_i32 = arith.constant 0 : i32
    %c0_i32_0 = arith.constant 0 : i32
    %c0_i32_1 = arith.constant 0 : i32
    return %c0_i32, %c0_i32_0 : i32, i32
  }
  func.func @transform_3(%arg0: i32) -> (i32, i32, i32) {
    %c0_i32 = arith.constant 0 : i32
    %c0_i32_0 = arith.constant 0 : i32
    %c0_i32_1 = arith.constant 0 : i32
    return %arg0, %c0_i32, %c0_i32_0 : i32, i32, i32
  }
}

</mosaic_0001>

<llo_original>
// kernel: tpu_custom_call.1
$region0: #{tpu_custom_call.1}
  #allocation0 [shape = 'u32[]', space=smem, size = 0x4, offset = 0x4, fixed_abs, tag = 'smem constant byte address 0x4 - core index']
  #allocation1 [shape = 'u32[144,128]{1,0:T(1,128)}', space=vmem, size = 0x12000, scoped, tag = 'internal scratch']
  %s0 = inlined_call_operand.hbm [shape: f32[2,4,4,512], index: 0, kind: input, shape index: {}]
  %s1 = inlined_call_operand.vmem [shape: f32[9,4,4], index: 1, kind: input, shape index: {}]
  %s2 = inlined_call_operand.vmem [shape: f32[4,1], index: 2, kind: input, shape index: {}]
  %s3 = inlined_call_operand.hbm [shape: f32[2,4,384], index: 3, kind: output, shape index: {}]
  %s4 = sld [smem:[#allocation0]]
  $region49: #{tpu_custom_call.1} parent=0
    _
  %s6 = ssub.s32 1, %s4
  %s7 = scalar_select 0, %s6, %s4
  $region1: #{tpu_custom_call.1} parent=0
    #allocation2 [shape = 'u8[65536]{0}', space=vmem, size = 0x10000, scoped, tag = 'input window, operand 0']
    #allocation3 [shape = 's32[2]{0}', space=sflag, size = 0x8, scoped, tag = 'scoped memory for tpu_custom_call.1']
    #allocation4 [shape = 's32[2]{0}', space=sflag, size = 0x8, scoped, tag = 'scoped memory for tpu_custom_call.1']
    #allocation5 [shape = 'u8[12288]{0}', space=vmem, size = 0x3000, scoped, tag = 'output window, operand 0']
    %8 = vsyncpa [#allocation3], 0
    %s9 = scalar_lea.sflag [#allocation3], 1
    %10 = vsyncpa %s9, 0
    %11 = vsyncpa [#allocation4], 0
    %s12 = scalar_lea.sflag [#allocation4], 1
    %13 = vsyncpa %s12, 0
    loop: start=0, step=1, limit=4
    $region2: #{tpu_custom_call.1} parent=1 // loop_pre_header
      _
    $region3: #{tpu_custom_call.1} parent=1 // loop_header
      %s15 = sphi 0, %s19
      %p16 = scmp.ge.s32.totalorder %s15, 4
      %s25 = sphi 0, %s27
      %s28 = sphi 0, %s25
      %s29 = sphi 0, %s28
      %s45 = sphi 0, %s29
      %s49 = sphi 0, %s49
      %s51 = sphi 0, %s49
      %s52 = sphi 0, %s51
      %s66 = sphi 0, %s52
      %s70 = sphi 0, %s70
      %s72 = sphi 0, %s70
      %s73 = sphi 0, %s72
      %s87 = sphi 0, %s73
      %s93 = sphi 0, %s95
      %s96 = sphi 0, %s93
      %s97 = sphi 0, %s96
      %s113 = sphi 0, %s97
    $region4: #{tpu_custom_call.1} parent=1 // loop_header_branch
      %18 = sbr.rel (%p16) target = $region8
    $region5: #{tpu_custom_call.1} parent=1 // loop_body
      %s20 = ssub.s32 %s15, 1
      %s21 = ssub.s32 %s15, 2
      %s22 = sadd.s32 %s15, 1
      %s23 = ssub.s32 %s15, %s22
      %p24 = scmp.eq.s32.totalorder %s23, 0
      %s26 = sadd.s32 %s25, 1
      %s27 = scalar_select %p24, %s25, %s26
      %p30 = pneg %p24
      %p31 = scmp.eq.s32.totalorder %s15, 1
      %p32 = por %p30, %p31
      %p33 = scmp.ne.s32.totalorder %s25, %s28
      %p34 = scmp.eq.s32.totalorder %s15, 0
      %p35 = por %p33, %p34
      %p36 = scmp.ne.s32.totalorder %s25, %s28
      %p37 = scmp.eq.s32.totalorder %s20, 1
      %p38 = por %p36, %p37
      %p39 = scmp.ne.s32.totalorder %s28, %s29
      %p40 = scmp.eq.s32.totalorder %s20, 0
      %p41 = por %p39, %p40
      %p42 = scmp.ne.s32.totalorder %s28, %s29
      %p43 = scmp.eq.s32.totalorder %s21, 1
      %p44 = por %p42, %p43
      %p46 = scmp.ne.s32.totalorder %s29, %s45
      %p47 = scmp.eq.s32.totalorder %s21, 0
      %p48 = por %p46, %p47
      %s50 = sadd.s32 %s49, 1
      %p53 = scmp.eq.s32.totalorder %s15, 1
      %p54 = scmp.ne.s32.totalorder %s49, %s51
      %p55 = scmp.eq.s32.totalorder %s15, 0
      %p56 = por %p54, %p55
      %p57 = scmp.ne.s32.totalorder %s49, %s51
      %p58 = scmp.eq.s32.totalorder %s20, 1
      %p59 = por %p57, %p58
      %p60 = scmp.ne.s32.totalorder %s51, %s52
      %p61 = scmp.eq.s32.totalorder %s20, 0
      %p62 = por %p60, %p61
      %p63 = scmp.ne.s32.totalorder %s51, %s52
      %p64 = scmp.eq.s32.totalorder %s21, 1
      %p65 = por %p63, %p64
      %p67 = scmp.ne.s32.totalorder %s52, %s66
      %p68 = scmp.eq.s32.totalorder %s21, 0
      %p69 = por %p67, %p68
      %s71 = sadd.s32 %s70, 1
      %p74 = scmp.eq.s32.totalorder %s15, 1
      %p75 = scmp.ne.s32.totalorder %s70, %s72
      %p76 = scmp.eq.s32.totalorder %s15, 0
      %p77 = por %p75, %p76
      %p78 = scmp.ne.s32.totalorder %s70, %s72
      %p79 = scmp.eq.s32.totalorder %s20, 1
      %p80 = por %p78, %p79
      %p81 = scmp.ne.s32.totalorder %s72, %s73
      %p82 = scmp.eq.s32.totalorder %s20, 0
      %p83 = por %p81, %p82
      %p84 = scmp.ne.s32.totalorder %s72, %s73
      %p85 = scmp.eq.s32.totalorder %s21, 1
      %p86 = por %p84, %p85
      %p88 = scmp.ne.s32.totalorder %s73, %s87
      %p89 = scmp.eq.s32.totalorder %s21, 0
      %p90 = por %p88, %p89
      %s91 = ssub.s32 %s15, %s22
      %p92 = scmp.eq.s32.totalorder %s91, 0
      %s94 = sadd.s32 %s93, 1
      %s95 = scalar_select %p92, %s93, %s94
      %p98 = pneg %p92
      %p99 = scmp.eq.s32.totalorder %s15, 1
      %p100 = por %p98, %p99
      %p101 = scmp.ne.s32.totalorder %s93, %s96
      %p102 = scmp.eq.s32.totalorder %s15, 0
      %p103 = por %p101, %p102
      %p104 = scmp.ne.s32.totalorder %s93, %s96
      %p105 = scmp.eq.s32.totalorder %s20, 1
      %p106 = por %p104, %p105
      %p107 = scmp.ne.s32.totalorder %s96, %s97
      %p108 = scmp.eq.s32.totalorder %s20, 0
      %p109 = por %p107, %p108
      %p110 = scmp.ne.s32.totalorder %s96, %s97
      %p111 = scmp.eq.s32.totalorder %s21, 1
      %p112 = por %p110, %p111
      %p114 = scmp.ne.s32.totalorder %s97, %s113
      %p115 = scmp.eq.s32.totalorder %s21, 0
      %p116 = por %p114, %p115
      %p117 = scmp.le.s32.totalorder 1, %s15
      %p118 = scmp.lt.s32.totalorder %s15, 3
      %p119 = pnand %p117, %p118
      %p120 = pneg %p119
      // Predicated region
      $region9: #{tpu_custom_call.1} parent=5 // pred_check
        _
      $region10: #{tpu_custom_call.1} parent=5 // pred_check_branch
        %122 = sbr.rel (%p119) target = $region12
      $region11: #{tpu_custom_call.1} parent=5 // pred_region
        %s123 = ssub.s32 %s15, 1
        // Predicated region
        $region13: #{tpu_custom_call.1} parent=11 // pred_check
          %p124 = pneg %p62
        $region14: #{tpu_custom_call.1} parent=11 // pred_check_branch
          %126 = sbr.rel (%p124) target = $region16
        $region15: #{tpu_custom_call.1} parent=11 // pred_region
          _
        $region16: #{tpu_custom_call.1} parent=11 // pred_fallthru
          _
        // Predicated region
        $region17: #{tpu_custom_call.1} parent=11 // pred_check
          %p127 = pneg %p83
        $region18: #{tpu_custom_call.1} parent=11 // pred_check_branch
          %129 = sbr.rel (%p127) target = $region20
        $region19: #{tpu_custom_call.1} parent=11 // pred_region
          _
        $region20: #{tpu_custom_call.1} parent=11 // pred_fallthru
          _
      $region12: #{tpu_custom_call.1} parent=5 // pred_fallthru
        _
      %p130 = scmp.lt.s32.totalorder %s15, 2
      // Predicated region
      $region21: #{tpu_custom_call.1} parent=5 // pred_check
        %p131 = pneg %p130
      $region22: #{tpu_custom_call.1} parent=5 // pred_check_branch
        %133 = sbr.rel (%p131) target = $region24
      $region23: #{tpu_custom_call.1} parent=5 // pred_region
        // Predicated region
        $region25: #{tpu_custom_call.1} parent=23 // pred_check
          %p134 = pneg %p35
        $region26: #{tpu_custom_call.1} parent=23 // pred_check_branch
          %136 = sbr.rel (%p134) target = $region28
        $region27: #{tpu_custom_call.1} parent=23 // pred_region
          %s137 = sand.u32 %s25, 1
          %s138 = scalar_lea.sflag [#allocation3], %s137
          %s139 = sand.u32 %s25, 1
          %s140 = smul.addr %s139, 64
          %s141 = scalar_lea.vmem [#allocation2], %s140
          %s143 = ssub.s32 1024, 1024
          %144 = vsyncadd %s138, %s143
          %s145 = smul.addr %s15, 16
          %s146 = smul.addr %s145, 64
          %s147 = scalar_lea.hbm %s0, %s146
          %s148 = sshll.u32 %s141, 4
          %s149 = int_to_ptr.vmem [resolvable:$true] %s148
          %154 = dma.hbm_to_vmem [thread:$0]  %s147, 1024, %s149, %s138, 256, 256, 16
        $region28: #{tpu_custom_call.1} parent=23 // pred_fallthru
          _
      $region24: #{tpu_custom_call.1} parent=5 // pred_fallthru
        _
      %p155 = scmp.le.s32.totalorder 1, %s15
      %p156 = scmp.lt.s32.totalorder %s15, 3
      %p157 = pnand %p155, %p156
      %p158 = pneg %p157
      // Predicated region
      $region29: #{tpu_custom_call.1} parent=5 // pred_check
        _
      $region30: #{tpu_custom_call.1} parent=5 // pred_check_branch
        %160 = sbr.rel (%p157) target = $region32
      $region31: #{tpu_custom_call.1} parent=5 // pred_region
        %s161 = ssub.s32 %s15, 1
        %s162 = sand.u32 %s28, 1
        %s163 = scalar_lea.sflag [#allocation3], %s162
        %s164 = sand.u32 %s28, 1
        %s165 = smul.addr %s164, 64
        %s166 = scalar_lea.vmem [#allocation2], %s165
        // Predicated region
        $region33: #{tpu_custom_call.1} parent=31 // pred_check
          %p167 = pneg %p41
        $region34: #{tpu_custom_call.1} parent=31 // pred_check_branch
          %169 = sbr.rel (%p167) target = $region36
        $region35: #{tpu_custom_call.1} parent=31 // pred_region
          %170 = dma.done %s163, 1024
        $region36: #{tpu_custom_call.1} parent=31 // pred_fallthru
          _
        %s171 = sand.u32 %s28, 1
        %s172 = scalar_lea.sflag [#allocation3], %s171
        %s173 = sand.u32 %s28, 1
        %s174 = smul.addr %s173, 64
        %s175 = scalar_lea.vmem [#allocation2], %s174
        %p176 = pneg %p41
        %p177 = pneg %p38
        %p178 = pneg %p62
        %p179 = pneg %p59
        %p180 = pneg %p83
        %p181 = pneg %p80
        %p182 = pneg %p109
        %p183 = pneg %p106
        %s184 = sand.u32 %s96, 1
        %s185 = scalar_lea.sflag [#allocation4], %s184
        %s186 = sand.u32 %s96, 1
        %s187 = smul.addr %s186, 12
        %s188 = scalar_lea.vmem [#allocation5], %s187
        %v189 = vld [vmem:[%s166] sm:$0xff]
        %v190 = vld [vmem:[%s166 + $0x8] sm:$0xf]
        %v191 = vld [vmem:[%s1] sm:$0xf]
        %s192 = scalar_lea.vmem %s166, 16 [#allocation2]
        %v193 = vld [vmem:[%s192] sm:$0xff]
        %v194 = vld [vmem:[%s192 + $0x8] sm:$0xf]
        %s195 = scalar_lea.vmem %s1, 4
        %v196 = vld [vmem:[%s195] sm:$0xf]
        %v199 = vcombine.high %v193, %v193
        %vm200 = vcmask 31744
        %v202 = vsel %vm200, %v196, 0
        %vm204 = vcmask 1043456
        %v205 = vsel %vm204, %v193, 0
        %v207 = vsel %vm204, %v199, 0
        %v209 = vsel %vm204, %v194, 0
        %211 = vmatprep.subr.mxu0 %v207
        %212 = vmatpush1.msra.mxu0 %v205
        %213 = vmatprep.subr.mxu0 0.0
        %214 = vmatpush1.msra.mxu0 0.0
        %215 = vmatprep.subr.mxu0 0.0
        %216 = vmatpush1.msra.mxu0 0.0
        %217 = vmatprep.subr.mxu0 0.0
        %218 = vmatpush1.msra.mxu0 0.0
        %219 = vmatprep.subr.mxu0 0.0
        %220 = vmatpush1.msra.mxu0 0.0
        %221 = vmatprep.subr.mxu0 0.0
        %222 = vmatpush1.msra.mxu0 0.0
        %223 = vmatprep.subr.mxu0 0.0
        %224 = vmatpush1.msra.mxu0 0.0
        %225 = vmatprep.subr.mxu0 0.0
        %226 = vmatpush1.msra.mxu0 0.0
        %227 = vmatprep.subr.mxu0 0.0
        %228 = vmatpush1.msra.mxu0 0.0
        %229 = vmatprep.subr.mxu0 0.0
        %230 = vmatpush1.msra.mxu0 0.0
        %231 = vmatprep.subr.mxu0 0.0
        %232 = vmatpush1.msra.mxu0 0.0
        %233 = vmatprep.subr.mxu0 0.0
        %234 = vmatpush1.msra.mxu0 0.0
        %235 = vmatprep.subr.mxu0 0.0
        %236 = vmatpush1.msra.mxu0 0.0
        %237 = vmatprep.subr.mxu0 0.0
        %238 = vmatpush1.msra.mxu0 0.0
        %239 = vmatprep.subr.mxu0 0.0
        %240 = vmatpush1.msra.mxu0 0.0
        %241 = vmatprep.subr.mxu0 0.0
        %242 = vmatpush1.msra.mxu0 0.0
        %243 = vmatprep.subr.mxu0 0.0
        %244 = vmatpush1.msra.mxu0 0.0
        %245 = vmatprep.subr.mxu0 0.0
        %246 = vmatpush1.msra.mxu0 0.0
        %247 = vmatprep.subr.mxu0 0.0
        %248 = vmatpush1.msra.mxu0 0.0
        %249 = vmatprep.subr.mxu0 0.0
        %250 = vmatpush1.msra.mxu0 0.0
        %251 = vmatprep.subr.mxu0 0.0
        %252 = vmatpush1.msra.mxu0 0.0
        %253 = vmatprep.subr.mxu0 0.0
        %254 = vmatpush1.msra.mxu0 0.0
        %255 = vmatprep.subr.mxu0 0.0
        %256 = vmatpush1.msra.mxu0 0.0
        %257 = vmatprep.subr.mxu0 0.0
        %258 = vmatpush1.msra.mxu0 0.0
        %259 = vmatprep.subr.mxu0 0.0
        %260 = vmatpush1.msra.mxu0 0.0
        %261 = vmatprep.subr.mxu0 0.0
        %262 = vmatpush1.msra.mxu0 0.0
        %263 = vmatprep.subr.mxu0 0.0
        %264 = vmatpush1.msra.mxu0 0.0
        %265 = vmatprep.subr.mxu0 0.0
        %266 = vmatpush1.msra.mxu0 0.0
        %267 = vmatprep.subr.mxu0 0.0
        %268 = vmatpush1.msra.mxu0 0.0
        %269 = vmatprep.subr.mxu0 0.0
        %270 = vmatpush1.msra.mxu0 0.0
        %271 = vmatprep.subr.mxu0 0.0
        %272 = vmatpush1.msra.mxu0 0.0
        %273 = vmatprep.subr.mxu0 0.0
        %274 = vmatpush1.msra.mxu0 0.0
        %275 = vmatprep.mubr.f32.mxu0 0.0
        %276 = vmatmul.mubr.f32.gmra.mrb[0].mxu0 %v202
        %v277 = vpop.f32.mrb[0].mxu0
        %v278 = vadd.f32 0.0, %v277
        %v279 = vpop.f32.mrb[0].mxu0
        %v280 = vadd.f32 0.0, %v279
        %281 = vdwg.mxu0
        %282 = vmatprep.subr.mxu0 0.0
        %283 = vmatpush1.msra.mxu0 %v209
        %284 = vmatprep.subr.mxu0 0.0
        %285 = vmatpush1.msra.mxu0 0.0
        %286 = vmatprep.subr.mxu0 0.0
        %287 = vmatpush1.msra.mxu0 0.0
        %288 = vmatprep.subr.mxu0 0.0
        %289 = vmatpush1.msra.mxu0 0.0
        %290 = vmatprep.subr.mxu0 0.0
        %291 = vmatpush1.msra.mxu0 0.0
        %292 = vmatprep.subr.mxu0 0.0
        %293 = vmatpush1.msra.mxu0 0.0
        %294 = vmatprep.subr.mxu0 0.0
        %295 = vmatpush1.msra.mxu0 0.0
        %296 = vmatprep.subr.mxu0 0.0
        %297 = vmatpush1.msra.mxu0 0.0
        %298 = vmatprep.subr.mxu0 0.0
        %299 = vmatpush1.msra.mxu0 0.0
        %300 = vmatprep.subr.mxu0 0.0
        %301 = vmatpush1.msra.mxu0 0.0
        %302 = vmatprep.subr.mxu0 0.0
        %303 = vmatpush1.msra.mxu0 0.0
        %304 = vmatprep.subr.mxu0 0.0
        %305 = vmatpush1.msra.mxu0 0.0
        %306 = vmatprep.subr.mxu0 0.0
        %307 = vmatpush1.msra.mxu0 0.0
        %308 = vmatprep.subr.mxu0 0.0
        %309 = vmatpush1.msra.mxu0 0.0
        %310 = vmatprep.subr.mxu0 0.0
        %311 = vmatpush1.msra.mxu0 0.0
        %312 = vmatprep.subr.mxu0 0.0
        %313 = vmatpush1.msra.mxu0 0.0
        %314 = vmatprep.subr.mxu0 0.0
        %315 = vmatpush1.msra.mxu0 0.0
        %316 = vmatprep.subr.mxu0 0.0
        %317 = vmatpush1.msra.mxu0 0.0
        %318 = vmatprep.subr.mxu0 0.0
        %319 = vmatpush1.msra.mxu0 0.0
        %320 = vmatprep.subr.mxu0 0.0
        %321 = vmatpush1.msra.mxu0 0.0
        %322 = vmatprep.subr.mxu0 0.0
        %323 = vmatpush1.msra.mxu0 0.0
        %324 = vmatprep.subr.mxu0 0.0
        %325 = vmatpush1.msra.mxu0 0.0
        %326 = vmatprep.subr.mxu0 0.0
        %327 = vmatpush1.msra.mxu0 0.0
        %328 = vmatprep.subr.mxu0 0.0
        %329 = vmatpush1.msra.mxu0 0.0
        %330 = vmatprep.subr.mxu0 0.0
        %331 = vmatpush1.msra.mxu0 0.0
        %332 = vmatprep.subr.mxu0 0.0
        %333 = vmatpush1.msra.mxu0 0.0
        %334 = vmatprep.subr.mxu0 0.0
        %335 = vmatpush1.msra.mxu0 0.0
        %336 = vmatprep.subr.mxu0 0.0
        %337 = vmatpush1.msra.mxu0 0.0
        %338 = vmatprep.subr.mxu0 0.0
        %339 = vmatpush1.msra.mxu0 0.0
        %340 = vmatprep.subr.mxu0 0.0
        %341 = vmatpush1.msra.mxu0 0.0
        %342 = vmatprep.subr.mxu0 0.0
        %343 = vmatpush1.msra.mxu0 0.0
        %344 = vmatprep.subr.mxu0 0.0
        %345 = vmatpush1.msra.mxu0 0.0
        %346 = vmatprep.mubr.f32.mxu0 0.0
        %347 = vmatmul.mubr.f32.gmra.mrb[0].mxu0 %v202
        %v348 = vpop.f32.mrb[0].mxu0
        %v349 = vadd.f32 0.0, %v348
        %v350 = vpop.f32.mrb[0].mxu0
        %351 = vdwg.mxu0
        %v354 = vcombine.high %v189, %v189
        %v356 = vsel %vm200, %v191, 0
        %v358 = vsel %vm204, %v189, 0
        %v360 = vsel %vm204, %v354, 0
        %v362 = vsel %vm204, %v190, 0
        %364 = vmatprep.subr.mxu0 %v360
        %365 = vmatpush1.msra.mxu0 %v358
        %366 = vmatprep.subr.mxu0 0.0
        %367 = vmatpush1.msra.mxu0 0.0
        %368 = vmatprep.subr.mxu0 0.0
        %369 = vmatpush1.msra.mxu0 0.0
        %370 = vmatprep.subr.mxu0 0.0
        %371 = vmatpush1.msra.mxu0 0.0
        %372 = vmatprep.subr.mxu0 0.0
        %373 = vmatpush1.msra.mxu0 0.0
        %374 = vmatprep.subr.mxu0 0.0
        %375 = vmatpush1.msra.mxu0 0.0
        %376 = vmatprep.subr.mxu0 0.0
        %377 = vmatpush1.msra.mxu0 0.0
        %378 = vmatprep.subr.mxu0 0.0
        %379 = vmatpush1.msra.mxu0 0.0
        %380 = vmatprep.subr.mxu0 0.0
        %381 = vmatpush1.msra.mxu0 0.0
        %382 = vmatprep.subr.mxu0 0.0
        %383 = vmatpush1.msra.mxu0 0.0
        %384 = vmatprep.subr.mxu0 0.0
        %385 = vmatpush1.msra.mxu0 0.0
        %386 = vmatprep.subr.mxu0 0.0
        %387 = vmatpush1.msra.mxu0 0.0
        %388 = vmatprep.subr.mxu0 0.0
        %389 = vmatpush1.msra.mxu0 0.0
        %390 = vmatprep.subr.mxu0 0.0
        %391 = vmatpush1.msra.mxu0 0.0
        %392 = vmatprep.subr.mxu0 0.0
        %393 = vmatpush1.msra.mxu0 0.0
        %394 = vmatprep.subr.mxu0 0.0
        %395 = vmatpush1.msra.mxu0 0.0
        %396 = vmatprep.subr.mxu0 0.0
        %397 = vmatpush1.msra.mxu0 0.0
        %398 = vmatprep.subr.mxu0 0.0
        %399 = vmatpush1.msra.mxu0 0.0
        %400 = vmatprep.subr.mxu0 0.0
        %401 = vmatpush1.msra.mxu0 0.0
        %402 = vmatprep.subr.mxu0 0.0
        %403 = vmatpush1.msra.mxu0 0.0
        %404 = vmatprep.subr.mxu0 0.0
        %405 = vmatpush1.msra.mxu0 0.0
        %406 = vmatprep.subr.mxu0 0.0
        %407 = vmatpush1.msra.mxu0 0.0
        %408 = vmatprep.subr.mxu0 0.0
        %409 = vmatpush1.msra.mxu0 0.0
        %410 = vmatprep.subr.mxu0 0.0
        %411 = vmatpush1.msra.mxu0 0.0
        %412 = vmatprep.subr.mxu0 0.0
        %413 = vmatpush1.msra.mxu0 0.0
        %414 = vmatprep.subr.mxu0 0.0
        %415 = vmatpush1.msra.mxu0 0.0
        %416 = vmatprep.subr.mxu0 0.0
        %417 = vmatpush1.msra.mxu0 0.0
        %418 = vmatprep.subr.mxu0 0.0
        %419 = vmatpush1.msra.mxu0 0.0
        %420 = vmatprep.subr.mxu0 0.0
        %421 = vmatpush1.msra.mxu0 0.0
        %422 = vmatprep.subr.mxu0 0.0
        %423 = vmatpush1.msra.mxu0 0.0
        %424 = vmatprep.subr.mxu0 0.0
        %425 = vmatpush1.msra.mxu0 0.0
        %426 = vmatprep.subr.mxu0 0.0
        %427 = vmatpush1.msra.mxu0 0.0
        %428 = vmatprep.mubr.f32.mxu0 0.0
        %429 = vmatmul.mubr.f32.gmra.mrb[0].mxu0 %v356
        %v430 = vpop.f32.mrb[0].mxu0
        %v431 = vadd.f32 %v278, %v430
        %v432 = vpop.f32.mrb[0].mxu0
        %v433 = vadd.f32 %v280, %v432
        %434 = vdwg.mxu0
        %435 = vmatprep.subr.mxu0 0.0
        %436 = vmatpush1.msra.mxu0 %v362
        %437 = vmatprep.subr.mxu0 0.0
        %438 = vmatpush1.msra.mxu0 0.0
        %439 = vmatprep.subr.mxu0 0.0
        %440 = vmatpush1.msra.mxu0 0.0
        %441 = vmatprep.subr.mxu0 0.0
        %442 = vmatpush1.msra.mxu0 0.0
        %443 = vmatprep.subr.mxu0 0.0
        %444 = vmatpush1.msra.mxu0 0.0
        %445 = vmatprep.subr.mxu0 0.0
        %446 = vmatpush1.msra.mxu0 0.0
        %447 = vmatprep.subr.mxu0 0.0
        %448 = vmatpush1.msra.mxu0 0.0
        %449 = vmatprep.subr.mxu0 0.0
        %450 = vmatpush1.msra.mxu0 0.0
        %451 = vmatprep.subr.mxu0 0.0
        %452 = vmatpush1.msra.mxu0 0.0
        %453 = vmatprep.subr.mxu0 0.0
        %454 = vmatpush1.msra.mxu0 0.0
        %455 = vmatprep.subr.mxu0 0.0
        %456 = vmatpush1.msra.mxu0 0.0
        %457 = vmatprep.subr.mxu0 0.0
        %458 = vmatpush1.msra.mxu0 0.0
        %459 = vmatprep.subr.mxu0 0.0
        %460 = vmatpush1.msra.mxu0 0.0
        %461 = vmatprep.subr.mxu0 0.0
        %462 = vmatpush1.msra.mxu0 0.0
        %463 = vmatprep.subr.mxu0 0.0
        %464 = vmatpush1.msra.mxu0 0.0
        %465 = vmatprep.subr.mxu0 0.0
        %466 = vmatpush1.msra.mxu0 0.0
        %467 = vmatprep.subr.mxu0 0.0
        %468 = vmatpush1.msra.mxu0 0.0
        %469 = vmatprep.subr.mxu0 0.0
        %470 = vmatpush1.msra.mxu0 0.0
        %471 = vmatprep.subr.mxu0 0.0
        %472 = vmatpush1.msra.mxu0 0.0
        %473 = vmatprep.subr.mxu0 0.0
        %474 = vmatpush1.msra.mxu0 0.0
        %475 = vmatprep.subr.mxu0 0.0
        %476 = vmatpush1.msra.mxu0 0.0
        %477 = vmatprep.subr.mxu0 0.0
        %478 = vmatpush1.msra.mxu0 0.0
        %479 = vmatprep.subr.mxu0 0.0
        %480 = vmatpush1.msra.mxu0 0.0
        %481 = vmatprep.subr.mxu0 0.0
        %482 = vmatpush1.msra.mxu0 0.0
        %483 = vmatprep.subr.mxu0 0.0
        %484 = vmatpush1.msra.mxu0 0.0
        %485 = vmatprep.subr.mxu0 0.0
        %486 = vmatpush1.msra.mxu0 0.0
        %487 = vmatprep.subr.mxu0 0.0
        %488 = vmatpush1.msra.mxu0 0.0
        %489 = vmatprep.subr.mxu0 0.0
        %490 = vmatpush1.msra.mxu0 0.0
        %491 = vmatprep.subr.mxu0 0.0
        %492 = vmatpush1.msra.mxu0 0.0
        %493 = vmatprep.subr.mxu0 0.0
        %494 = vmatpush1.msra.mxu0 0.0
        %495 = vmatprep.subr.mxu0 0.0
        %496 = vmatpush1.msra.mxu0 0.0
        %497 = vmatprep.subr.mxu0 0.0
        %498 = vmatpush1.msra.mxu0 0.0
        %499 = vmatprep.mubr.f32.mxu0 0.0
        %500 = vmatmul.mubr.f32.gmra.mrb[0].mxu0 %v356
        %v501 = vpop.f32.mrb[0].mxu0
        %v502 = vadd.f32 %v349, %v501
        %v503 = vpop.f32.mrb[0].mxu0
        %504 = vdwg.mxu0
        %v505 = vld [vmem:[%s166] sm:$0xff]
        %v506 = vld [vmem:[%s166 + $0x8] sm:$0xff]
        %s507 = scalar_lea.vmem %s1, 8
        %v508 = vld [vmem:[%s507] sm:$0xf]
        %v511 = vcombine.high %v505, %v505
        %v512 = vcombine.high %v506, %v506
        %513 = vrot.lane.b32.xlu0 %v505, 127
        %v514 = vpop.permute.xlu0 %513
        %515 = vrot.lane.b32.xlu0 %v511, 127
        %v516 = vpop.permute.xlu0 %515
        %517 = vrot.lane.b32.xlu0 %v506, 127
        %v518 = vpop.permute.xlu0 %517
        %519 = vrot.lane.b32.xlu0 %v512, 127
        %v520 = vpop.permute.xlu0 %519
        %vm521 = vcmask 1039360
        %v522 = vsel %vm521, %v514, %v516
        %v523 = vsel %vm521, %v516, %v518
        %v524 = vsel %vm521, %v518, %v520
        %v526 = vsel %vm200, %v508, 0
        %v528 = vsel %vm204, %v522, 0
        %v530 = vsel %vm204, %v523, 0
        %v532 = vsel %vm204, %v524, 0
        %534 = vmatprep.subr.mxu0 %v530
        %535 = vmatpush1.msra.mxu0 %v528
        %536 = vmatprep.subr.mxu0 0.0
        %537 = vmatpush1.msra.mxu0 0.0
        %538 = vmatprep.subr.mxu0 0.0
        %539 = vmatpush1.msra.mxu0 0.0
        %540 = vmatprep.subr.mxu0 0.0
        %541 = vmatpush1.msra.mxu0 0.0
        %542 = vmatprep.subr.mxu0 0.0
        %543 = vmatpush1.msra.mxu0 0.0
        %544 = vmatprep.subr.mxu0 0.0
        %545 = vmatpush1.msra.mxu0 0.0
        %546 = vmatprep.subr.mxu0 0.0
        %547 = vmatpush1.msra.mxu0 0.0
        %548 = vmatprep.subr.mxu0 0.0
        %549 = vmatpush1.msra.mxu0 0.0
        %550 = vmatprep.subr.mxu0 0.0
        %551 = vmatpush1.msra.mxu0 0.0
        %552 = vmatprep.subr.mxu0 0.0
        %553 = vmatpush1.msra.mxu0 0.0
        %554 = vmatprep.subr.mxu0 0.0
        %555 = vmatpush1.msra.mxu0 0.0
        %556 = vmatprep.subr.mxu0 0.0
        %557 = vmatpush1.msra.mxu0 0.0
        %558 = vmatprep.subr.mxu0 0.0
        %559 = vmatpush1.msra.mxu0 0.0
        %560 = vmatprep.subr.mxu0 0.0
        %561 = vmatpush1.msra.mxu0 0.0
        %562 = vmatprep.subr.mxu0 0.0
        %563 = vmatpush1.msra.mxu0 0.0
        %564 = vmatprep.subr.mxu0 0.0
        %565 = vmatpush1.msra.mxu0 0.0
        %566 = vmatprep.subr.mxu0 0.0
        %567 = vmatpush1.msra.mxu0 0.0
        %568 = vmatprep.subr.mxu0 0.0
        %569 = vmatpush1.msra.mxu0 0.0
        %570 = vmatprep.subr.mxu0 0.0
        %571 = vmatpush1.msra.mxu0 0.0
        %572 = vmatprep.subr.mxu0 0.0
        %573 = vmatpush1.msra.mxu0 0.0
        %574 = vmatprep.subr.mxu0 0.0
        %575 = vmatpush1.msra.mxu0 0.0
        %576 = vmatprep.subr.mxu0 0.0
        %577 = vmatpush1.msra.mxu0 0.0
        %578 = vmatprep.subr.mxu0 0.0
        %579 = vmatpush1.msra.mxu0 0.0
        %580 = vmatprep.subr.mxu0 0.0
        %581 = vmatpush1.msra.mxu0 0.0
        %582 = vmatprep.subr.mxu0 0.0
        %583 = vmatpush1.msra.mxu0 0.0
        %584 = vmatprep.subr.mxu0 0.0
        %585 = vmatpush1.msra.mxu0 0.0
        %586 = vmatprep.subr.mxu0 0.0
        %587 = vmatpush1.msra.mxu0 0.0
        %588 = vmatprep.subr.mxu0 0.0
        %589 = vmatpush1.msra.mxu0 0.0
        %590 = vmatprep.subr.mxu0 0.0
        %591 = vmatpush1.msra.mxu0 0.0
        %592 = vmatprep.subr.mxu0 0.0
        %593 = vmatpush1.msra.mxu0 0.0
        %594 = vmatprep.subr.mxu0 0.0
        %595 = vmatpush1.msra.mxu0 0.0
        %596 = vmatprep.subr.mxu0 0.0
        %597 = vmatpush1.msra.mxu0 0.0
        %598 = vmatprep.mubr.f32.mxu0 0.0
        %599 = vmatmul.mubr.f32.gmra.mrb[0].mxu0 %v526
        %v600 = vpop.f32.mrb[0].mxu0
        %v601 = vadd.f32 0.0, %v600
        %v602 = vpop.f32.mrb[0].mxu0
        %v603 = vadd.f32 0.0, %v602
        %604 = vdwg.mxu0
        %605 = vmatprep.subr.mxu0 0.0
        %606 = vmatpush1.msra.mxu0 %v532
        %607 = vmatprep.subr.mxu0 0.0
        %608 = vmatpush1.msra.mxu0 0.0
        %609 = vmatprep.subr.mxu0 0.0
        %610 = vmatpush1.msra.mxu0 0.0
        %611 = vmatprep.subr.mxu0 0.0
        %612 = vmatpush1.msra.mxu0 0.0
        %613 = vmatprep.subr.mxu0 0.0
        %614 = vmatpush1.msra.mxu0 0.0
        %615 = vmatprep.subr.mxu0 0.0
        %616 = vmatpush1.msra.mxu0 0.0
        %617 = vmatprep.subr.mxu0 0.0
        %618 = vmatpush1.msra.mxu0 0.0
        %619 = vmatprep.subr.mxu0 0.0
        %620 = vmatpush1.msra.mxu0 0.0
        %621 = vmatprep.subr.mxu0 0.0
        %622 = vmatpush1.msra.mxu0 0.0
        %623 = vmatprep.subr.mxu0 0.0
        %624 = vmatpush1.msra.mxu0 0.0
        %625 = vmatprep.subr.mxu0 0.0
        %626 = vmatpush1.msra.mxu0 0.0
        %627 = vmatprep.subr.mxu0 0.0
        %628 = vmatpush1.msra.mxu0 0.0
        %629 = vmatprep.subr.mxu0 0.0
        %630 = vmatpush1.msra.mxu0 0.0
        %631 = vmatprep.subr.mxu0 0.0
        %632 = vmatpush1.msra.mxu0 0.0
        %633 = vmatprep.subr.mxu0 0.0
        %634 = vmatpush1.msra.mxu0 0.0
        %635 = vmatprep.subr.mxu0 0.0
        %636 = vmatpush1.msra.mxu0 0.0
        %637 = vmatprep.subr.mxu0 0.0
        %638 = vmatpush1.msra.mxu0 0.0
        %639 = vmatprep.subr.mxu0 0.0
        %640 = vmatpush1.msra.mxu0 0.0
        %641 = vmatprep.subr.mxu0 0.0
        %642 = vmatpush1.msra.mxu0 0.0
        %643 = vmatprep.subr.mxu0 0.0
        %644 = vmatpush1.msra.mxu0 0.0
        %645 = vmatprep.subr.mxu0 0.0
        %646 = vmatpush1.msra.mxu0 0.0
        %647 = vmatprep.subr.mxu0 0.0
        %648 = vmatpush1.msra.mxu0 0.0
        %649 = vmatprep.subr.mxu0 0.0
        %650 = vmatpush1.msra.mxu0 0.0
        %651 = vmatprep.subr.mxu0 0.0
        %652 = vmatpush1.msra.mxu0 0.0
        %653 = vmatprep.subr.mxu0 0.0
        %654 = vmatpush1.msra.mxu0 0.0
        %655 = vmatprep.subr.mxu0 0.0
        %656 = vmatpush1.msra.mxu0 0.0
        %657 = vmatprep.subr.mxu0 0.0
        %658 = vmatpush1.msra.mxu0 0.0
        %659 = vmatprep.subr.mxu0 0.0
        %660 = vmatpush1.msra.mxu0 0.0
        %661 = vmatprep.subr.mxu0 0.0
        %662 = vmatpush1.msra.mxu0 0.0
        %663 = vmatprep.subr.mxu0 0.0
        %664 = vmatpush1.msra.mxu0 0.0
        %665 = vmatprep.subr.mxu0 0.0
        %666 = vmatpush1.msra.mxu0 0.0
        %667 = vmatprep.subr.mxu0 0.0
        %668 = vmatpush1.msra.mxu0 0.0
        %669 = vmatprep.mubr.f32.mxu0 0.0
        %670 = vmatmul.mubr.f32.gmra.mrb[0].mxu0 %v526
        %v671 = vpop.f32.mrb[0].mxu0
        %v672 = vadd.f32 0.0, %v671
        %v673 = vpop.f32.mrb[0].mxu0
        %674 = vdwg.mxu0
        %v675 = vadd.f32 %v431, %v601
        %v676 = vadd.f32 %v433, %v603
        %v677 = vadd.f32 %v502, %v672
        %s678 = scalar_lea.vmem %s166, 32 [#allocation2]
        %v679 = vld [vmem:[%s678] sm:$0xff]
        %v680 = vld [vmem:[%s678 + $0x8] sm:$0xf]
        %s681 = scalar_lea.vmem %s1, 12
        %v682 = vld [vmem:[%s681] sm:$0xf]
        %v685 = vcombine.high %v679, %v679
        %v687 = vsel %vm200, %v682, 0
        %v689 = vsel %vm204, %v679, 0
        %v691 = vsel %vm204, %v685, 0
        %v693 = vsel %vm204, %v680, 0
        %695 = vmatprep.subr.mxu0 %v691
        %696 = vmatpush1.msra.mxu0 %v689
        %697 = vmatprep.subr.mxu0 0.0
        %698 = vmatpush1.msra.mxu0 0.0
        %699 = vmatprep.subr.mxu0 0.0
        %700 = vmatpush1.msra.mxu0 0.0
        %701 = vmatprep.subr.mxu0 0.0
        %702 = vmatpush1.msra.mxu0 0.0
        %703 = vmatprep.subr.mxu0 0.0
        %704 = vmatpush1.msra.mxu0 0.0
        %705 = vmatprep.subr.mxu0 0.0
        %706 = vmatpush1.msra.mxu0 0.0
        %707 = vmatprep.subr.mxu0 0.0
        %708 = vmatpush1.msra.mxu0 0.0
        %709 = vmatprep.subr.mxu0 0.0
        %710 = vmatpush1.msra.mxu0 0.0
        %711 = vmatprep.subr.mxu0 0.0
        %712 = vmatpush1.msra.mxu0 0.0
        %713 = vmatprep.subr.mxu0 0.0
        %714 = vmatpush1.msra.mxu0 0.0
        %715 = vmatprep.subr.mxu0 0.0
        %716 = vmatpush1.msra.mxu0 0.0
        %717 = vmatprep.subr.mxu0 0.0
        %718 = vmatpush1.msra.mxu0 0.0
        %719 = vmatprep.subr.mxu0 0.0
        %720 = vmatpush1.msra.mxu0 0.0
        %721 = vmatprep.subr.mxu0 0.0
        %722 = vmatpush1.msra.mxu0 0.0
        %723 = vmatprep.subr.mxu0 0.0
        %724 = vmatpush1.msra.mxu0 0.0
        %725 = vmatprep.subr.mxu0 0.0
        %726 = vmatpush1.msra.mxu0 0.0
        %727 = vmatprep.subr.mxu0 0.0
        %728 = vmatpush1.msra.mxu0 0.0
        %729 = vmatprep.subr.mxu0 0.0
        %730 = vmatpush1.msra.mxu0 0.0
        %731 = vmatprep.subr.mxu0 0.0
        %732 = vmatpush1.msra.mxu0 0.0
        %733 = vmatprep.subr.mxu0 0.0
        %734 = vmatpush1.msra.mxu0 0.0
        %735 = vmatprep.subr.mxu0 0.0
        %736 = vmatpush1.msra.mxu0 0.0
        %737 = vmatprep.subr.mxu0 0.0
        %738 = vmatpush1.msra.mxu0 0.0
        %739 = vmatprep.subr.mxu0 0.0
        %740 = vmatpush1.msra.mxu0 0.0
        %741 = vmatprep.subr.mxu0 0.0
        %742 = vmatpush1.msra.mxu0 0.0
        %743 = vmatprep.subr.mxu0 0.0
        %744 = vmatpush1.msra.mxu0 0.0
        %745 = vmatprep.subr.mxu0 0.0
        %746 = vmatpush1.msra.mxu0 0.0
        %747 = vmatprep.subr.mxu0 0.0
        %748 = vmatpush1.msra.mxu0 0.0
        %749 = vmatprep.subr.mxu0 0.0
        %750 = vmatpush1.msra.mxu0 0.0
        %751 = vmatprep.subr.mxu0 0.0
        %752 = vmatpush1.msra.mxu0 0.0
        %753 = vmatprep.subr.mxu0 0.0
        %754 = vmatpush1.msra.mxu0 0.0
        %755 = vmatprep.subr.mxu0 0.0
        %756 = vmatpush1.msra.mxu0 0.0
        %757 = vmatprep.subr.mxu0 0.0
        %758 = vmatpush1.msra.mxu0 0.0
        %759 = vmatprep.mubr.f32.mxu0 0.0
        %760 = vmatmul.mubr.f32.gmra.mrb[0].mxu0 %v687
        %v761 = vpop.f32.mrb[0].mxu0
        %v762 = vadd.f32 0.0, %v761
        %v763 = vpop.f32.mrb[0].mxu0
        %v764 = vadd.f32 0.0, %v763
        %765 = vdwg.mxu0
        %766 = vmatprep.subr.mxu0 0.0
        %767 = vmatpush1.msra.mxu0 %v693
        %768 = vmatprep.subr.mxu0 0.0
        %769 = vmatpush1.msra.mxu0 0.0
        %770 = vmatprep.subr.mxu0 0.0
        %771 = vmatpush1.msra.mxu0 0.0
        %772 = vmatprep.subr.mxu0 0.0
        %773 = vmatpush1.msra.mxu0 0.0
        %774 = vmatprep.subr.mxu0 0.0
        %775 = vmatpush1.msra.mxu0 0.0
        %776 = vmatprep.subr.mxu0 0.0
        %777 = vmatpush1.msra.mxu0 0.0
        %778 = vmatprep.subr.mxu0 0.0
        %779 = vmatpush1.msra.mxu0 0.0
        %780 = vmatprep.subr.mxu0 0.0
        %781 = vmatpush1.msra.mxu0 0.0
        %782 = vmatprep.subr.mxu0 0.0
        %783 = vmatpush1.msra.mxu0 0.0
        %784 = vmatprep.subr.mxu0 0.0
        %785 = vmatpush1.msra.mxu0 0.0
        %786 = vmatprep.subr.mxu0 0.0
        %787 = vmatpush1.msra.mxu0 0.0
        %788 = vmatprep.subr.mxu0 0.0
        %789 = vmatpush1.msra.mxu0 0.0
        %790 = vmatprep.subr.mxu0 0.0
        %791 = vmatpush1.msra.mxu0 0.0
        %792 = vmatprep.subr.mxu0 0.0
        %793 = vmatpush1.msra.mxu0 0.0
        %794 = vmatprep.subr.mxu0 0.0
        %795 = vmatpush1.msra.mxu0 0.0
        %796 = vmatprep.subr.mxu0 0.0
        %797 = vmatpush1.msra.mxu0 0.0
        %798 = vmatprep.subr.mxu0 0.0
        %799 = vmatpush1.msra.mxu0 0.0
        %800 = vmatprep.subr.mxu0 0.0
        %801 = vmatpush1.msra.mxu0 0.0
        %802 = vmatprep.subr.mxu0 0.0
        %803 = vmatpush1.msra.mxu0 0.0
        %804 = vmatprep.subr.mxu0 0.0
        %805 = vmatpush1.msra.mxu0 0.0
        %806 = vmatprep.subr.mxu0 0.0
        %807 = vmatpush1.msra.mxu0 0.0
        %808 = vmatprep.subr.mxu0 0.0
        %809 = vmatpush1.msra.mxu0 0.0
        %810 = vmatprep.subr.mxu0 0.0
        %811 = vmatpush1.msra.mxu0 0.0
        %812 = vmatprep.subr.mxu0 0.0
        %813 = vmatpush1.msra.mxu0 0.0
        %814 = vmatprep.subr.mxu0 0.0
        %815 = vmatpush1.msra.mxu0 0.0
        %816 = vmatprep.subr.mxu0 0.0
        %817 = vmatpush1.msra.mxu0 0.0
        %818 = vmatprep.subr.mxu0 0.0
        %819 = vmatpush1.msra.mxu0 0.0
        %820 = vmatprep.subr.mxu0 0.0
        %821 = vmatpush1.msra.mxu0 0.0
        %822 = vmatprep.subr.mxu0 0.0
        %823 = vmatpush1.msra.mxu0 0.0
        %824 = vmatprep.subr.mxu0 0.0
        %825 = vmatpush1.msra.mxu0 0.0
        %826 = vmatprep.subr.mxu0 0.0
        %827 = vmatpush1.msra.mxu0 0.0
        %828 = vmatprep.subr.mxu0 0.0
        %829 = vmatpush1.msra.mxu0 0.0
        %830 = vmatprep.mubr.f32.mxu0 0.0
        %831 = vmatmul.mubr.f32.gmra.mrb[0].mxu0 %v687
        %v832 = vpop.f32.mrb[0].mxu0
        %v833 = vadd.f32 0.0, %v832
        %v834 = vpop.f32.mrb[0].mxu0
        %835 = vdwg.mxu0
        %v836 = vadd.f32 %v675, %v762
        %v837 = vadd.f32 %v676, %v764
        %v838 = vadd.f32 %v677, %v833
        %s839 = scalar_lea.vmem %s166, 48 [#allocation2]
        %v840 = vld [vmem:[%s839] sm:$0xff]
        %v841 = vld [vmem:[%s839 + $0x8] sm:$0xf]
        %s842 = scalar_lea.vmem %s1, 16
        %v843 = vld [vmem:[%s842] sm:$0xf]
        %v846 = vcombine.high %v840, %v840
        %v848 = vsel %vm200, %v843, 0
        %v850 = vsel %vm204, %v840, 0
        %v852 = vsel %vm204, %v846, 0
        %v854 = vsel %vm204, %v841, 0
        %856 = vmatprep.subr.mxu0 %v852
        %857 = vmatpush1.msra.mxu0 %v850
        %858 = vmatprep.subr.mxu0 0.0
        %859 = vmatpush1.msra.mxu0 0.0
        %860 = vmatprep.subr.mxu0 0.0
        %861 = vmatpush1.msra.mxu0 0.0
        %862 = vmatprep.subr.mxu0 0.0
        %863 = vmatpush1.msra.mxu0 0.0
        %864 = vmatprep.subr.mxu0 0.0
        %865 = vmatpush1.msra.mxu0 0.0
        %866 = vmatprep.subr.mxu0 0.0
        %867 = vmatpush1.msra.mxu0 0.0
        %868 = vmatprep.subr.mxu0 0.0
        %869 = vmatpush1.msra.mxu0 0.0
        %870 = vmatprep.subr.mxu0 0.0
        %871 = vmatpush1.msra.mxu0 0.0
        %872 = vmatprep.subr.mxu0 0.0
        %873 = vmatpush1.msra.mxu0 0.0
        %874 = vmatprep.subr.mxu0 0.0
        %875 = vmatpush1.msra.mxu0 0.0
        %876 = vmatprep.subr.mxu0 0.0
        %877 = vmatpush1.msra.mxu0 0.0
        %878 = vmatprep.subr.mxu0 0.0
        %879 = vmatpush1.msra.mxu0 0.0
        %880 = vmatprep.subr.mxu0 0.0
        %881 = vmatpush1.msra.mxu0 0.0
        %882 = vmatprep.subr.mxu0 0.0
        %883 = vmatpush1.msra.mxu0 0.0
        %884 = vmatprep.subr.mxu0 0.0
        %885 = vmatpush1.msra.mxu0 0.0
        %886 = vmatprep.subr.mxu0 0.0
        %887 = vmatpush1.msra.mxu0 0.0
        %888 = vmatprep.subr.mxu0 0.0
        %889 = vmatpush1.msra.mxu0 0.0
        %890 = vmatprep.subr.mxu0 0.0
        %891 = vmatpush1.msra.mxu0 0.0
        %892 = vmatprep.subr.mxu0 0.0
        %893 = vmatpush1.msra.mxu0 0.0
        %894 = vmatprep.subr.mxu0 0.0
        %895 = vmatpush1.msra.mxu0 0.0
        %896 = vmatprep.subr.mxu0 0.0
        %897 = vmatpush1.msra.mxu0 0.0
        %898 = vmatprep.subr.mxu0 0.0
        %899 = vmatpush1.msra.mxu0 0.0
        %900 = vmatprep.subr.mxu0 0.0
        %901 = vmatpush1.msra.mxu0 0.0
        %902 = vmatprep.subr.mxu0 0.0
        %903 = vmatpush1.msra.mxu0 0.0
        %904 = vmatprep.subr.mxu0 0.0
        %905 = vmatpush1.msra.mxu0 0.0
        %906 = vmatprep.subr.mxu0 0.0
        %907 = vmatpush1.msra.mxu0 0.0
        %908 = vmatprep.subr.mxu0 0.0
        %909 = vmatpush1.msra.mxu0 0.0
        %910 = vmatprep.subr.mxu0 0.0
        %911 = vmatpush1.msra.mxu0 0.0
        %912 = vmatprep.subr.mxu0 0.0
        %913 = vmatpush1.msra.mxu0 0.0
        %914 = vmatprep.subr.mxu0 0.0
        %915 = vmatpush1.msra.mxu0 0.0
        %916 = vmatprep.subr.mxu0 0.0
        %917 = vmatpush1.msra.mxu0 0.0
        %918 = vmatprep.subr.mxu0 0.0
        %919 = vmatpush1.msra.mxu0 0.0
        %920 = vmatprep.mubr.f32.mxu0 0.0
        %921 = vmatmul.mubr.f32.gmra.mrb[0].mxu0 %v848
        %v922 = vpop.f32.mrb[0].mxu0
        %v923 = vadd.f32 0.0, %v922
        %v924 = vpop.f32.mrb[0].mxu0
        %v925 = vadd.f32 0.0, %v924
        %926 = vdwg.mxu0
        %927 = vmatprep.subr.mxu0 0.0
        %928 = vmatpush1.msra.mxu0 %v854
        %929 = vmatprep.subr.mxu0 0.0
        %930 = vmatpush1.msra.mxu0 0.0
        %931 = vmatprep.subr.mxu0 0.0
        %932 = vmatpush1.msra.mxu0 0.0
        %933 = vmatprep.subr.mxu0 0.0
        %934 = vmatpush1.msra.mxu0 0.0
        %935 = vmatprep.subr.mxu0 0.0
        %936 = vmatpush1.msra.mxu0 0.0
        %937 = vmatprep.subr.mxu0 0.0
        %938 = vmatpush1.msra.mxu0 0.0
        %939 = vmatprep.subr.mxu0 0.0
        %940 = vmatpush1.msra.mxu0 0.0
        %941 = vmatprep.subr.mxu0 0.0
        %942 = vmatpush1.msra.mxu0 0.0
        %943 = vmatprep.subr.mxu0 0.0
        %944 = vmatpush1.msra.mxu0 0.0
        %945 = vmatprep.subr.mxu0 0.0
        %946 = vmatpush1.msra.mxu0 0.0
        %947 = vmatprep.subr.mxu0 0.0
        %948 = vmatpush1.msra.mxu0 0.0
        %949 = vmatprep.subr.mxu0 0.0
        %950 = vmatpush1.msra.mxu0 0.0
        %951 = vmatprep.subr.mxu0 0.0
        %952 = vmatpush1.msra.mxu0 0.0
        %953 = vmatprep.subr.mxu0 0.0
        %954 = vmatpush1.msra.mxu0 0.0
        %955 = vmatprep.subr.mxu0 0.0
        %956 = vmatpush1.msra.mxu0 0.0
        %957 = vmatprep.subr.mxu0 0.0
        %958 = vmatpush1.msra.mxu0 0.0
        %959 = vmatprep.subr.mxu0 0.0
        %960 = vmatpush1.msra.mxu0 0.0
        %961 = vmatprep.subr.mxu0 0.0
        %962 = vmatpush1.msra.mxu0 0.0
        %963 = vmatprep.subr.mxu0 0.0
        %964 = vmatpush1.msra.mxu0 0.0
        %965 = vmatprep.subr.mxu0 0.0
        %966 = vmatpush1.msra.mxu0 0.0
        %967 = vmatprep.subr.mxu0 0.0
        %968 = vmatpush1.msra.mxu0 0.0
        %969 = vmatprep.subr.mxu0 0.0
        %970 = vmatpush1.msra.mxu0 0.0
        %971 = vmatprep.subr.mxu0 0.0
        %972 = vmatpush1.msra.mxu0 0.0
        %973 = vmatprep.subr.mxu0 0.0
        %974 = vmatpush1.msra.mxu0 0.0
        %975 = vmatprep.subr.mxu0 0.0
        %976 = vmatpush1.msra.mxu0 0.0
        %977 = vmatprep.subr.mxu0 0.0
        %978 = vmatpush1.msra.mxu0 0.0
        %979 = vmatprep.subr.mxu0 0.0
        %980 = vmatpush1.msra.mxu0 0.0
        %981 = vmatprep.subr.mxu0 0.0
        %982 = vmatpush1.msra.mxu0 0.0
        %983 = vmatprep.subr.mxu0 0.0
        %984 = vmatpush1.msra.mxu0 0.0
        %985 = vmatprep.subr.mxu0 0.0
        %986 = vmatpush1.msra.mxu0 0.0
        %987 = vmatprep.subr.mxu0 0.0
        %988 = vmatpush1.msra.mxu0 0.0
        %989 = vmatprep.subr.mxu0 0.0
        %990 = vmatpush1.msra.mxu0 0.0
        %991 = vmatprep.mubr.f32.mxu0 0.0
        %992 = vmatmul.mubr.f32.gmra.mrb[0].mxu0 %v848
        %v993 = vpop.f32.mrb[0].mxu0
        %v994 = vadd.f32 0.0, %v993
        %v995 = vpop.f32.mrb[0].mxu0
        %996 = vdwg.mxu0
        %v997 = vadd.f32 %v836, %v923
        %v998 = vadd.f32 %v837, %v925
        %v999 = vadd.f32 %v838, %v994
        %v1000 = vld [vmem:[%s678] sm:$0xff]
        %v1001 = vld [vmem:[%s678 + $0x8] sm:$0xff]
        %s1002 = scalar_lea.vmem %s1, 20
        %v1003 = vld [vmem:[%s1002] sm:$0xf]
        %v1006 = vcombine.high %v1000, %v1000
        %v1007 = vcombine.high %v1001, %v1001
        %1008 = vrot.lane.b32.xlu0 %v1000, 127
        %v1009 = vpop.permute.xlu0 %1008
        %1010 = vrot.lane.b32.xlu0 %v1006, 127
        %v1011 = vpop.permute.xlu0 %1010
        %1012 = vrot.lane.b32.xlu0 %v1001, 127
        %v1013 = vpop.permute.xlu0 %1012
        %1014 = vrot.lane.b32.xlu0 %v1007, 127
        %v1015 = vpop.permute.xlu0 %1014
        %v1016 = vsel %vm521, %v1009, %v1011
        %v1017 = vsel %vm521, %v1011, %v1013
        %v1018 = vsel %vm521, %v1013, %v1015
        %v1020 = vsel %vm200, %v1003, 0
        %v1022 = vsel %vm204, %v1016, 0
        %v1024 = vsel %vm204, %v1017, 0
        %v1026 = vsel %vm204, %v1018, 0
        %1028 = vmatprep.subr.mxu0 %v1024
        %1029 = vmatpush1.msra.mxu0 %v1022
        %1030 = vmatprep.subr.mxu0 0.0
        %1031 = vmatpush1.msra.mxu0 0.0
        %1032 = vmatprep.subr.mxu0 0.0
        %1033 = vmatpush1.msra.mxu0 0.0
        %1034 = vmatprep.subr.mxu0 0.0
        %1035 = vmatpush1.msra.mxu0 0.0
        %1036 = vmatprep.subr.mxu0 0.0
        %1037 = vmatpush1.msra.mxu0 0.0
        %1038 = vmatprep.subr.mxu0 0.0
        %1039 = vmatpush1.msra.mxu0 0.0
        %1040 = vmatprep.subr.mxu0 0.0
        %1041 = vmatpush1.msra.mxu0 0.0
        %1042 = vmatprep.subr.mxu0 0.0
        %1043 = vmatpush1.msra.mxu0 0.0
        %1044 = vmatprep.subr.mxu0 0.0
        %1045 = vmatpush1.msra.mxu0 0.0
        %1046 = vmatprep.subr.mxu0 0.0
        %1047 = vmatpush1.msra.mxu0 0.0
        %1048 = vmatprep.subr.mxu0 0.0
        %1049 = vmatpush1.msra.mxu0 0.0
        %1050 = vmatprep.subr.mxu0 0.0
        %1051 = vmatpush1.msra.mxu0 0.0
        %1052 = vmatprep.subr.mxu0 0.0
        %1053 = vmatpush1.msra.mxu0 0.0
        %1054 = vmatprep.subr.mxu0 0.0
        %1055 = vmatpush1.msra.mxu0 0.0
        %1056 = vmatprep.subr.mxu0 0.0
        %1057 = vmatpush1.msra.mxu0 0.0
        %1058 = vmatprep.subr.mxu0 0.0
        %1059 = vmatpush1.msra.mxu0 0.0
        %1060 = vmatprep.subr.mxu0 0.0
        %1061 = vmatpush1.msra.mxu0 0.0
        %1062 = vmatprep.subr.mxu0 0.0
        %1063 = vmatpush1.msra.mxu0 0.0
        %1064 = vmatprep.subr.mxu0 0.0
        %1065 = vmatpush1.msra.mxu0 0.0
        %1066 = vmatprep.subr.mxu0 0.0
        %1067 = vmatpush1.msra.mxu0 0.0
        %1068 = vmatprep.subr.mxu0 0.0
        %1069 = vmatpush1.msra.mxu0 0.0
        %1070 = vmatprep.subr.mxu0 0.0
        %1071 = vmatpush1.msra.mxu0 0.0
        %1072 = vmatprep.subr.mxu0 0.0
        %1073 = vmatpush1.msra.mxu0 0.0
        %1074 = vmatprep.subr.mxu0 0.0
        %1075 = vmatpush1.msra.mxu0 0.0
        %1076 = vmatprep.subr.mxu0 0.0
        %1077 = vmatpush1.msra.mxu0 0.0
        %1078 = vmatprep.subr.mxu0 0.0
        %1079 = vmatpush1.msra.mxu0 0.0
        %1080 = vmatprep.subr.mxu0 0.0
        %1081 = vmatpush1.msra.mxu0 0.0
        %1082 = vmatprep.subr.mxu0 0.0
        %1083 = vmatpush1.msra.mxu0 0.0
        %1084 = vmatprep.subr.mxu0 0.0
        %1085 = vmatpush1.msra.mxu0 0.0
        %1086 = vmatprep.subr.mxu0 0.0
        %1087 = vmatpush1.msra.mxu0 0.0
        %1088 = vmatprep.subr.mxu0 0.0
        %1089 = vmatpush1.msra.mxu0 0.0
        %1090 = vmatprep.subr.mxu0 0.0
        %1091 = vmatpush1.msra.mxu0 0.0
        %1092 = vmatprep.mubr.f32.mxu0 0.0
        %1093 = vmatmul.mubr.f32.gmra.mrb[0].mxu0 %v1020
        %v1094 = vpop.f32.mrb[0].mxu0
        %v1095 = vadd.f32 0.0, %v1094
        %v1096 = vpop.f32.mrb[0].mxu0
        %v1097 = vadd.f32 0.0, %v1096
        %1098 = vdwg.mxu0
        %1099 = vmatprep.subr.mxu0 0.0
        %1100 = vmatpush1.msra.mxu0 %v1026
        %1101 = vmatprep.subr.mxu0 0.0
        %1102 = vmatpush1.msra.mxu0 0.0
        %1103 = vmatprep.subr.mxu0 0.0
        %1104 = vmatpush1.msra.mxu0 0.0
        %1105 = vmatprep.subr.mxu0 0.0
        %1106 = vmatpush1.msra.mxu0 0.0
        %1107 = vmatprep.subr.mxu0 0.0
        %1108 = vmatpush1.msra.mxu0 0.0
        %1109 = vmatprep.subr.mxu0 0.0
        %1110 = vmatpush1.msra.mxu0 0.0
        %1111 = vmatprep.subr.mxu0 0.0
        %1112 = vmatpush1.msra.mxu0 0.0
        %1113 = vmatprep.subr.mxu0 0.0
        %1114 = vmatpush1.msra.mxu0 0.0
        %1115 = vmatprep.subr.mxu0 0.0
        %1116 = vmatpush1.msra.mxu0 0.0
        %1117 = vmatprep.subr.mxu0 0.0
        %1118 = vmatpush1.msra.mxu0 0.0
        %1119 = vmatprep.subr.mxu0 0.0
        %1120 = vmatpush1.msra.mxu0 0.0
        %1121 = vmatprep.subr.mxu0 0.0
        %1122 = vmatpush1.msra.mxu0 0.0
        %1123 = vmatprep.subr.mxu0 0.0
        %1124 = vmatpush1.msra.mxu0 0.0
        %1125 = vmatprep.subr.mxu0 0.0
        %1126 = vmatpush1.msra.mxu0 0.0
        %1127 = vmatprep.subr.mxu0 0.0
        %1128 = vmatpush1.msra.mxu0 0.0
        %1129 = vmatprep.subr.mxu0 0.0
        %1130 = vmatpush1.msra.mxu0 0.0
        %1131 = vmatprep.subr.mxu0 0.0
        %1132 = vmatpush1.msra.mxu0 0.0
        %1133 = vmatprep.subr.mxu0 0.0
        %1134 = vmatpush1.msra.mxu0 0.0
        %1135 = vmatprep.subr.mxu0 0.0
        %1136 = vmatpush1.msra.mxu0 0.0
        %1137 = vmatprep.subr.mxu0 0.0
        %1138 = vmatpush1.msra.mxu0 0.0
        %1139 = vmatprep.subr.mxu0 0.0
        %1140 = vmatpush1.msra.mxu0 0.0
        %1141 = vmatprep.subr.mxu0 0.0
        %1142 = vmatpush1.msra.mxu0 0.0
        %1143 = vmatprep.subr.mxu0 0.0
        %1144 = vmatpush1.msra.mxu0 0.0
        %1145 = vmatprep.subr.mxu0 0.0
        %1146 = vmatpush1.msra.mxu0 0.0
        %1147 = vmatprep.subr.mxu0 0.0
        %1148 = vmatpush1.msra.mxu0 0.0
        %1149 = vmatprep.subr.mxu0 0.0
        %1150 = vmatpush1.msra.mxu0 0.0
        %1151 = vmatprep.subr.mxu0 0.0
        %1152 = vmatpush1.msra.mxu0 0.0
        %1153 = vmatprep.subr.mxu0 0.0
        %1154 = vmatpush1.msra.mxu0 0.0
        %1155 = vmatprep.subr.mxu0 0.0
        %1156 = vmatpush1.msra.mxu0 0.0
        %1157 = vmatprep.subr.mxu0 0.0
        %1158 = vmatpush1.msra.mxu0 0.0
        %1159 = vmatprep.subr.mxu0 0.0
        %1160 = vmatpush1.msra.mxu0 0.0
        %1161 = vmatprep.subr.mxu0 0.0
        %1162 = vmatpush1.msra.mxu0 0.0
        %1163 = vmatprep.mubr.f32.mxu0 0.0
        %1164 = vmatmul.mubr.f32.gmra.mrb[0].mxu0 %v1020
        %v1165 = vpop.f32.mrb[0].mxu0
        %v1166 = vadd.f32 0.0, %v1165
        %v1167 = vpop.f32.mrb[0].mxu0
        %1168 = vdwg.mxu0
        %v1169 = vadd.f32 %v997, %v1095
        %v1170 = vadd.f32 %v998, %v1097
        %v1171 = vadd.f32 %v999, %v1166
        %v1172 = vld [vmem:[%s166] sm:$0xff]
        %v1173 = vld [vmem:[%s166 + $0x8] sm:$0xff]
        %s1174 = scalar_lea.vmem %s1, 24
        %v1175 = vld [vmem:[%s1174] sm:$0xf]
        %v1178 = vcombine.high %v1172, %v1172
        %v1179 = vcombine.high %v1173, %v1173
        %1180 = vrot.lane.b32.xlu0 %v1172, 104
        %v1181 = vpop.permute.xlu0 %1180
        %1182 = vrot.lane.b32.xlu0 %v1178, 104
        %v1183 = vpop.permute.xlu0 %1182
        %1184 = vrot.lane.b32.xlu0 %v1173, 104
        %v1185 = vpop.permute.xlu0 %1184
        %1186 = vrot.lane.b32.xlu0 %v1179, 104
        %v1187 = vpop.permute.xlu0 %1186
        %vm1188 = vcmask 850944
        %v1189 = vsel %vm1188, %v1181, %v1183
        %v1190 = vsel %vm1188, %v1183, %v1185
        %v1191 = vsel %vm1188, %v1185, %v1187
        %v1193 = vsel %vm200, %v1175, 0
        %v1195 = vsel %vm204, %v1189, 0
        %v1197 = vsel %vm204, %v1190, 0
        %v1199 = vsel %vm204, %v1191, 0
        %1201 = vmatprep.subr.mxu0 %v1197
        %1202 = vmatpush1.msra.mxu0 %v1195
        %1203 = vmatprep.subr.mxu0 0.0
        %1204 = vmatpush1.msra.mxu0 0.0
        %1205 = vmatprep.subr.mxu0 0.0
        %1206 = vmatpush1.msra.mxu0 0.0
        %1207 = vmatprep.subr.mxu0 0.0
        %1208 = vmatpush1.msra.mxu0 0.0
        %1209 = vmatprep.subr.mxu0 0.0
        %1210 = vmatpush1.msra.mxu0 0.0
        %1211 = vmatprep.subr.mxu0 0.0
        %1212 = vmatpush1.msra.mxu0 0.0
        %1213 = vmatprep.subr.mxu0 0.0
        %1214 = vmatpush1.msra.mxu0 0.0
        %1215 = vmatprep.subr.mxu0 0.0
        %1216 = vmatpush1.msra.mxu0 0.0
        %1217 = vmatprep.subr.mxu0 0.0
        %1218 = vmatpush1.msra.mxu0 0.0
        %1219 = vmatprep.subr.mxu0 0.0
        %1220 = vmatpush1.msra.mxu0 0.0
        %1221 = vmatprep.subr.mxu0 0.0
        %1222 = vmatpush1.msra.mxu0 0.0
        %1223 = vmatprep.subr.mxu0 0.0
        %1224 = vmatpush1.msra.mxu0 0.0
        %1225 = vmatprep.subr.mxu0 0.0
        %1226 = vmatpush1.msra.mxu0 0.0
        %1227 = vmatprep.subr.mxu0 0.0
        %1228 = vmatpush1.msra.mxu0 0.0
        %1229 = vmatprep.subr.mxu0 0.0
        %1230 = vmatpush1.msra.mxu0 0.0
        %1231 = vmatprep.subr.mxu0 0.0
        %1232 = vmatpush1.msra.mxu0 0.0
        %1233 = vmatprep.subr.mxu0 0.0
        %1234 = vmatpush1.msra.mxu0 0.0
        %1235 = vmatprep.subr.mxu0 0.0
        %1236 = vmatpush1.msra.mxu0 0.0
        %1237 = vmatprep.subr.mxu0 0.0
        %1238 = vmatpush1.msra.mxu0 0.0
        %1239 = vmatprep.subr.mxu0 0.0
        %1240 = vmatpush1.msra.mxu0 0.0
        %1241 = vmatprep.subr.mxu0 0.0
        %1242 = vmatpush1.msra.mxu0 0.0
        %1243 = vmatprep.subr.mxu0 0.0
        %1244 = vmatpush1.msra.mxu0 0.0
        %1245 = vmatprep.subr.mxu0 0.0
        %1246 = vmatpush1.msra.mxu0 0.0
        %1247 = vmatprep.subr.mxu0 0.0
        %1248 = vmatpush1.msra.mxu0 0.0
        %1249 = vmatprep.subr.mxu0 0.0
        %1250 = vmatpush1.msra.mxu0 0.0
        %1251 = vmatprep.subr.mxu0 0.0
        %1252 = vmatpush1.msra.mxu0 0.0
        %1253 = vmatprep.subr.mxu0 0.0
        %1254 = vmatpush1.msra.mxu0 0.0
        %1255 = vmatprep.subr.mxu0 0.0
        %1256 = vmatpush1.msra.mxu0 0.0
        %1257 = vmatprep.subr.mxu0 0.0
        %1258 = vmatpush1.msra.mxu0 0.0
        %1259 = vmatprep.subr.mxu0 0.0
        %1260 = vmatpush1.msra.mxu0 0.0
        %1261 = vmatprep.subr.mxu0 0.0
        %1262 = vmatpush1.msra.mxu0 0.0
        %1263 = vmatprep.subr.mxu0 0.0
        %1264 = vmatpush1.msra.mxu0 0.0
        %1265 = vmatprep.mubr.f32.mxu0 0.0
        %1266 = vmatmul.mubr.f32.gmra.mrb[0].mxu0 %v1193
        %v1267 = vpop.f32.mrb[0].mxu0
        %v1268 = vadd.f32 0.0, %v1267
        %v1269 = vpop.f32.mrb[0].mxu0
        %v1270 = vadd.f32 0.0, %v1269
        %1271 = vdwg.mxu0
        %1272 = vmatprep.subr.mxu0 0.0
        %1273 = vmatpush1.msra.mxu0 %v1199
        %1274 = vmatprep.subr.mxu0 0.0
        %1275 = vmatpush1.msra.mxu0 0.0
        %1276 = vmatprep.subr.mxu0 0.0
        %1277 = vmatpush1.msra.mxu0 0.0
        %1278 = vmatprep.subr.mxu0 0.0
        %1279 = vmatpush1.msra.mxu0 0.0
        %1280 = vmatprep.subr.mxu0 0.0
        %1281 = vmatpush1.msra.mxu0 0.0
        %1282 = vmatprep.subr.mxu0 0.0
        %1283 = vmatpush1.msra.mxu0 0.0
        %1284 = vmatprep.subr.mxu0 0.0
        %1285 = vmatpush1.msra.mxu0 0.0
        %1286 = vmatprep.subr.mxu0 0.0
        %1287 = vmatpush1.msra.mxu0 0.0
        %1288 = vmatprep.subr.mxu0 0.0
        %1289 = vmatpush1.msra.mxu0 0.0
        %1290 = vmatprep.subr.mxu0 0.0
        %1291 = vmatpush1.msra.mxu0 0.0
        %1292 = vmatprep.subr.mxu0 0.0
        %1293 = vmatpush1.msra.mxu0 0.0
        %1294 = vmatprep.subr.mxu0 0.0
        %1295 = vmatpush1.msra.mxu0 0.0
        %1296 = vmatprep.subr.mxu0 0.0
        %1297 = vmatpush1.msra.mxu0 0.0
        %1298 = vmatprep.subr.mxu0 0.0
        %1299 = vmatpush1.msra.mxu0 0.0
        %1300 = vmatprep.subr.mxu0 0.0
        %1301 = vmatpush1.msra.mxu0 0.0
        %1302 = vmatprep.subr.mxu0 0.0
        %1303 = vmatpush1.msra.mxu0 0.0
        %1304 = vmatprep.subr.mxu0 0.0
        %1305 = vmatpush1.msra.mxu0 0.0
        %1306 = vmatprep.subr.mxu0 0.0
        %1307 = vmatpush1.msra.mxu0 0.0
        %1308 = vmatprep.subr.mxu0 0.0
        %1309 = vmatpush1.msra.mxu0 0.0
        %1310 = vmatprep.subr.mxu0 0.0
        %1311 = vmatpush1.msra.mxu0 0.0
        %1312 = vmatprep.subr.mxu0 0.0
        %1313 = vmatpush1.msra.mxu0 0.0
        %1314 = vmatprep.subr.mxu0 0.0
        %1315 = vmatpush1.msra.mxu0 0.0
        %1316 = vmatprep.subr.mxu0 0.0
        %1317 = vmatpush1.msra.mxu0 0.0
        %1318 = vmatprep.subr.mxu0 0.0
        %1319 = vmatpush1.msra.mxu0 0.0
        %1320 = vmatprep.subr.mxu0 0.0
        %1321 = vmatpush1.msra.mxu0 0.0
        %1322 = vmatprep.subr.mxu0 0.0
        %1323 = vmatpush1.msra.mxu0 0.0
        %1324 = vmatprep.subr.mxu0 0.0
        %1325 = vmatpush1.msra.mxu0 0.0
        %1326 = vmatprep.subr.mxu0 0.0
        %1327 = vmatpush1.msra.mxu0 0.0
        %1328 = vmatprep.subr.mxu0 0.0
        %1329 = vmatpush1.msra.mxu0 0.0
        %1330 = vmatprep.subr.mxu0 0.0
        %1331 = vmatpush1.msra.mxu0 0.0
        %1332 = vmatprep.subr.mxu0 0.0
        %1333 = vmatpush1.msra.mxu0 0.0
        %1334 = vmatprep.subr.mxu0 0.0
        %1335 = vmatpush1.msra.mxu0 0.0
        %1336 = vmatprep.mubr.f32.mxu0 0.0
        %1337 = vmatmul.mubr.f32.gmra.mrb[0].mxu0 %v1193
        %v1338 = vpop.f32.mrb[0].mxu0
        %v1339 = vadd.f32 0.0, %v1338
        %v1340 = vpop.f32.mrb[0].mxu0
        %1341 = vdwg.mxu0
        %v1342 = vadd.f32 %v1169, %v1268
        %v1343 = vadd.f32 %v1170, %v1270
        %v1344 = vadd.f32 %v1171, %v1339
        %v1345 = vld [vmem:[%s192] sm:$0xff]
        %v1346 = vld [vmem:[%s192 + $0x8] sm:$0xff]
        %s1347 = scalar_lea.vmem %s1, 28
        %v1348 = vld [vmem:[%s1347] sm:$0xf]
        %v1351 = vcombine.high %v1345, %v1345
        %v1352 = vcombine.high %v1346, %v1346
        %1353 = vrot.lane.b32.xlu0 %v1345, 104
        %v1354 = vpop.permute.xlu0 %1353
        %1355 = vrot.lane.b32.xlu0 %v1351, 104
        %v1356 = vpop.permute.xlu0 %1355
        %1357 = vrot.lane.b32.xlu0 %v1346, 104
        %v1358 = vpop.permute.xlu0 %1357
        %1359 = vrot.lane.b32.xlu0 %v1352, 104
        %v1360 = vpop.permute.xlu0 %1359
        %v1361 = vsel %vm1188, %v1354, %v1356
        %v1362 = vsel %vm1188, %v1356, %v1358
        %v1363 = vsel %vm1188, %v1358, %v1360
        %v1365 = vsel %vm200, %v1348, 0
        %v1367 = vsel %vm204, %v1361, 0
        %v1369 = vsel %vm204, %v1362, 0
        %v1371 = vsel %vm204, %v1363, 0
        %1373 = vmatprep.subr.mxu0 %v1369
        %1374 = vmatpush1.msra.mxu0 %v1367
        %1375 = vmatprep.subr.mxu0 0.0
        %1376 = vmatpush1.msra.mxu0 0.0
        %1377 = vmatprep.subr.mxu0 0.0
        %1378 = vmatpush1.msra.mxu0 0.0
        %1379 = vmatprep.subr.mxu0 0.0
        %1380 = vmatpush1.msra.mxu0 0.0
        %1381 = vmatprep.subr.mxu0 0.0
        %1382 = vmatpush1.msra.mxu0 0.0
        %1383 = vmatprep.subr.mxu0 0.0
        %1384 = vmatpush1.msra.mxu0 0.0
        %1385 = vmatprep.subr.mxu0 0.0
        %1386 = vmatpush1.msra.mxu0 0.0
        %1387 = vmatprep.subr.mxu0 0.0
        %1388 = vmatpush1.msra.mxu0 0.0
        %1389 = vmatprep.subr.mxu0 0.0
        %1390 = vmatpush1.msra.mxu0 0.0
        %1391 = vmatprep.subr.mxu0 0.0
        %1392 = vmatpush1.msra.mxu0 0.0
        %1393 = vmatprep.subr.mxu0 0.0
        %1394 = vmatpush1.msra.mxu0 0.0
        %1395 = vmatprep.subr.mxu0 0.0
        %1396 = vmatpush1.msra.mxu0 0.0
        %1397 = vmatprep.subr.mxu0 0.0
        %1398 = vmatpush1.msra.mxu0 0.0
        %1399 = vmatprep.subr.mxu0 0.0
        %1400 = vmatpush1.msra.mxu0 0.0
        %1401 = vmatprep.subr.mxu0 0.0
        %1402 = vmatpush1.msra.mxu0 0.0
        %1403 = vmatprep.subr.mxu0 0.0
        %1404 = vmatpush1.msra.mxu0 0.0
        %1405 = vmatprep.subr.mxu0 0.0
        %1406 = vmatpush1.msra.mxu0 0.0
        %1407 = vmatprep.subr.mxu0 0.0
        %1408 = vmatpush1.msra.mxu0 0.0
        %1409 = vmatprep.subr.mxu0 0.0
        %1410 = vmatpush1.msra.mxu0 0.0
        %1411 = vmatprep.subr.mxu0 0.0
        %1412 = vmatpush1.msra.mxu0 0.0
        %1413 = vmatprep.subr.mxu0 0.0
        %1414 = vmatpush1.msra.mxu0 0.0
        %1415 = vmatprep.subr.mxu0 0.0
        %1416 = vmatpush1.msra.mxu0 0.0
        %1417 = vmatprep.subr.mxu0 0.0
        %1418 = vmatpush1.msra.mxu0 0.0
        %1419 = vmatprep.subr.mxu0 0.0
        %1420 = vmatpush1.msra.mxu0 0.0
        %1421 = vmatprep.subr.mxu0 0.0
        %1422 = vmatpush1.msra.mxu0 0.0
        %1423 = vmatprep.subr.mxu0 0.0
        %1424 = vmatpush1.msra.mxu0 0.0
        %1425 = vmatprep.subr.mxu0 0.0
        %1426 = vmatpush1.msra.mxu0 0.0
        %1427 = vmatprep.subr.mxu0 0.0
        %1428 = vmatpush1.msra.mxu0 0.0
        %1429 = vmatprep.subr.mxu0 0.0
        %1430 = vmatpush1.msra.mxu0 0.0
        %1431 = vmatprep.subr.mxu0 0.0
        %1432 = vmatpush1.msra.mxu0 0.0
        %1433 = vmatprep.subr.mxu0 0.0
        %1434 = vmatpush1.msra.mxu0 0.0
        %1435 = vmatprep.subr.mxu0 0.0
        %1436 = vmatpush1.msra.mxu0 0.0
        %1437 = vmatprep.mubr.f32.mxu0 0.0
        %1438 = vmatmul.mubr.f32.gmra.mrb[0].mxu0 %v1365
        %v1439 = vpop.f32.mrb[0].mxu0
        %v1440 = vadd.f32 0.0, %v1439
        %v1441 = vpop.f32.mrb[0].mxu0
        %v1442 = vadd.f32 0.0, %v1441
        %1443 = vdwg.mxu0
        %1444 = vmatprep.subr.mxu0 0.0
        %1445 = vmatpush1.msra.mxu0 %v1371
        %1446 = vmatprep.subr.mxu0 0.0
        %1447 = vmatpush1.msra.mxu0 0.0
        %1448 = vmatprep.subr.mxu0 0.0
        %1449 = vmatpush1.msra.mxu0 0.0
        %1450 = vmatprep.subr.mxu0 0.0
        %1451 = vmatpush1.msra.mxu0 0.0
        %1452 = vmatprep.subr.mxu0 0.0
        %1453 = vmatpush1.msra.mxu0 0.0
        %1454 = vmatprep.subr.mxu0 0.0
        %1455 = vmatpush1.msra.mxu0 0.0
        %1456 = vmatprep.subr.mxu0 0.0
        %1457 = vmatpush1.msra.mxu0 0.0
        %1458 = vmatprep.subr.mxu0 0.0
        %1459 = vmatpush1.msra.mxu0 0.0
        %1460 = vmatprep.subr.mxu0 0.0
        %1461 = vmatpush1.msra.mxu0 0.0
        %1462 = vmatprep.subr.mxu0 0.0
        %1463 = vmatpush1.msra.mxu0 0.0
        %1464 = vmatprep.subr.mxu0 0.0
        %1465 = vmatpush1.msra.mxu0 0.0
        %1466 = vmatprep.subr.mxu0 0.0
        %1467 = vmatpush1.msra.mxu0 0.0
        %1468 = vmatprep.subr.mxu0 0.0
        %1469 = vmatpush1.msra.mxu0 0.0
        %1470 = vmatprep.subr.mxu0 0.0
        %1471 = vmatpush1.msra.mxu0 0.0
        %1472 = vmatprep.subr.mxu0 0.0
        %1473 = vmatpush1.msra.mxu0 0.0
        %1474 = vmatprep.subr.mxu0 0.0
        %1475 = vmatpush1.msra.mxu0 0.0
        %1476 = vmatprep.subr.mxu0 0.0
        %1477 = vmatpush1.msra.mxu0 0.0
        %1478 = vmatprep.subr.mxu0 0.0
        %1479 = vmatpush1.msra.mxu0 0.0
        %1480 = vmatprep.subr.mxu0 0.0
        %1481 = vmatpush1.msra.mxu0 0.0
        %1482 = vmatprep.subr.mxu0 0.0
        %1483 = vmatpush1.msra.mxu0 0.0
        %1484 = vmatprep.subr.mxu0 0.0
        %1485 = vmatpush1.msra.mxu0 0.0
        %1486 = vmatprep.subr.mxu0 0.0
        %1487 = vmatpush1.msra.mxu0 0.0
        %1488 = vmatprep.subr.mxu0 0.0
        %1489 = vmatpush1.msra.mxu0 0.0
        %1490 = vmatprep.subr.mxu0 0.0
        %1491 = vmatpush1.msra.mxu0 0.0
        %1492 = vmatprep.subr.mxu0 0.0
        %1493 = vmatpush1.msra.mxu0 0.0
        %1494 = vmatprep.subr.mxu0 0.0
        %1495 = vmatpush1.msra.mxu0 0.0
        %1496 = vmatprep.subr.mxu0 0.0
        %1497 = vmatpush1.msra.mxu0 0.0
        %1498 = vmatprep.subr.mxu0 0.0
        %1499 = vmatpush1.msra.mxu0 0.0
        %1500 = vmatprep.subr.mxu0 0.0
        %1501 = vmatpush1.msra.mxu0 0.0
        %1502 = vmatprep.subr.mxu0 0.0
        %1503 = vmatpush1.msra.mxu0 0.0
        %1504 = vmatprep.subr.mxu0 0.0
        %1505 = vmatpush1.msra.mxu0 0.0
        %1506 = vmatprep.subr.mxu0 0.0
        %1507 = vmatpush1.msra.mxu0 0.0
        %1508 = vmatprep.mubr.f32.mxu0 0.0
        %1509 = vmatmul.mubr.f32.gmra.mrb[0].mxu0 %v1365
        %v1510 = vpop.f32.mrb[0].mxu0
        %v1511 = vadd.f32 0.0, %v1510
        %v1512 = vpop.f32.mrb[0].mxu0
        %1513 = vdwg.mxu0
        %v1514 = vadd.f32 %v1342, %v1440
        %v1515 = vadd.f32 %v1343, %v1442
        %v1516 = vadd.f32 %v1344, %v1511
        %v1517 = vld [vmem:[%s166] sm:$0xff]
        %v1518 = vld [vmem:[%s166 + $0x8] sm:$0xff]
        %s1519 = scalar_lea.vmem %s1, 32
        %v1520 = vld [vmem:[%s1519] sm:$0xf]
        %v1523 = vcombine.high %v1517, %v1517
        %v1524 = vcombine.high %v1518, %v1518
        %1525 = vrot.lane.b32.xlu0 %v1517, 103
        %v1526 = vpop.permute.xlu0 %1525
        %1527 = vrot.lane.b32.xlu0 %v1523, 103
        %v1528 = vpop.permute.xlu0 %1527
        %1529 = vrot.lane.b32.xlu0 %v1518, 103
        %v1530 = vpop.permute.xlu0 %1529
        %1531 = vrot.lane.b32.xlu0 %v1524, 103
        %v1532 = vpop.permute.xlu0 %1531
        %vm1533 = vcmask 842752
        %v1534 = vsel %vm1533, %v1526, %v1528
        %v1535 = vsel %vm1533, %v1528, %v1530
        %v1536 = vsel %vm1533, %v1530, %v1532
        %v1538 = vsel %vm200, %v1520, 0
        %v1540 = vsel %vm204, %v1534, 0
        %v1542 = vsel %vm204, %v1535, 0
        %v1544 = vsel %vm204, %v1536, 0
        %1546 = vmatprep.subr.mxu0 %v1542
        %1547 = vmatpush1.msra.mxu0 %v1540
        %1548 = vmatprep.subr.mxu0 0.0
        %1549 = vmatpush1.msra.mxu0 0.0
        %1550 = vmatprep.subr.mxu0 0.0
        %1551 = vmatpush1.msra.mxu0 0.0
        %1552 = vmatprep.subr.mxu0 0.0
        %1553 = vmatpush1.msra.mxu0 0.0
        %1554 = vmatprep.subr.mxu0 0.0
        %1555 = vmatpush1.msra.mxu0 0.0
        %1556 = vmatprep.subr.mxu0 0.0
        %1557 = vmatpush1.msra.mxu0 0.0
        %1558 = vmatprep.subr.mxu0 0.0
        %1559 = vmatpush1.msra.mxu0 0.0
        %1560 = vmatprep.subr.mxu0 0.0
        %1561 = vmatpush1.msra.mxu0 0.0
        %1562 = vmatprep.subr.mxu0 0.0
        %1563 = vmatpush1.msra.mxu0 0.0
        %1564 = vmatprep.subr.mxu0 0.0
        %1565 = vmatpush1.msra.mxu0 0.0
        %1566 = vmatprep.subr.mxu0 0.0
        %1567 = vmatpush1.msra.mxu0 0.0
        %1568 = vmatprep.subr.mxu0 0.0
        %1569 = vmatpush1.msra.mxu0 0.0
        %1570 = vmatprep.subr.mxu0 0.0
        %1571 = vmatpush1.msra.mxu0 0.0
        %1572 = vmatprep.subr.mxu0 0.0
        %1573 = vmatpush1.msra.mxu0 0.0
        %1574 = vmatprep.subr.mxu0 0.0
        %1575 = vmatpush1.msra.mxu0 0.0
        %1576 = vmatprep.subr.mxu0 0.0
        %1577 = vmatpush1.msra.mxu0 0.0
        %1578 = vmatprep.subr.mxu0 0.0
        %1579 = vmatpush1.msra.mxu0 0.0
        %1580 = vmatprep.subr.mxu0 0.0
        %1581 = vmatpush1.msra.mxu0 0.0
        %1582 = vmatprep.subr.mxu0 0.0
        %1583 = vmatpush1.msra.mxu0 0.0
        %1584 = vmatprep.subr.mxu0 0.0
        %1585 = vmatpush1.msra.mxu0 0.0
        %1586 = vmatprep.subr.mxu0 0.0
        %1587 = vmatpush1.msra.mxu0 0.0
        %1588 = vmatprep.subr.mxu0 0.0
        %1589 = vmatpush1.msra.mxu0 0.0
        %1590 = vmatprep.subr.mxu0 0.0
        %1591 = vmatpush1.msra.mxu0 0.0
        %1592 = vmatprep.subr.mxu0 0.0
        %1593 = vmatpush1.msra.mxu0 0.0
        %1594 = vmatprep.subr.mxu0 0.0
        %1595 = vmatpush1.msra.mxu0 0.0
        %1596 = vmatprep.subr.mxu0 0.0
        %1597 = vmatpush1.msra.mxu0 0.0
        %1598 = vmatprep.subr.mxu0 0.0
        %1599 = vmatpush1.msra.mxu0 0.0
        %1600 = vmatprep.subr.mxu0 0.0
        %1601 = vmatpush1.msra.mxu0 0.0
        %1602 = vmatprep.subr.mxu0 0.0
        %1603 = vmatpush1.msra.mxu0 0.0
        %1604 = vmatprep.subr.mxu0 0.0
        %1605 = vmatpush1.msra.mxu0 0.0
        %1606 = vmatprep.subr.mxu0 0.0
        %1607 = vmatpush1.msra.mxu0 0.0
        %1608 = vmatprep.subr.mxu0 0.0
        %1609 = vmatpush1.msra.mxu0 0.0
        %1610 = vmatprep.mubr.f32.mxu0 0.0
        %1611 = vmatmul.mubr.f32.gmra.mrb[0].mxu0 %v1538
        %v1612 = vpop.f32.mrb[0].mxu0
        %v1613 = vadd.f32 0.0, %v1612
        %v1614 = vpop.f32.mrb[0].mxu0
        %v1615 = vadd.f32 0.0, %v1614
        %1616 = vdwg.mxu0
        %1617 = vmatprep.subr.mxu0 0.0
        %1618 = vmatpush1.msra.mxu0 %v1544
        %1619 = vmatprep.subr.mxu0 0.0
        %1620 = vmatpush1.msra.mxu0 0.0
        %1621 = vmatprep.subr.mxu0 0.0
        %1622 = vmatpush1.msra.mxu0 0.0
        %1623 = vmatprep.subr.mxu0 0.0
        %1624 = vmatpush1.msra.mxu0 0.0
        %1625 = vmatprep.subr.mxu0 0.0
        %1626 = vmatpush1.msra.mxu0 0.0
        %1627 = vmatprep.subr.mxu0 0.0
        %1628 = vmatpush1.msra.mxu0 0.0
        %1629 = vmatprep.subr.mxu0 0.0
        %1630 = vmatpush1.msra.mxu0 0.0
        %1631 = vmatprep.subr.mxu0 0.0
        %1632 = vmatpush1.msra.mxu0 0.0
        %1633 = vmatprep.subr.mxu0 0.0
        %1634 = vmatpush1.msra.mxu0 0.0
        %1635 = vmatprep.subr.mxu0 0.0
        %1636 = vmatpush1.msra.mxu0 0.0
        %1637 = vmatprep.subr.mxu0 0.0
        %1638 = vmatpush1.msra.mxu0 0.0
        %1639 = vmatprep.subr.mxu0 0.0
        %1640 = vmatpush1.msra.mxu0 0.0
        %1641 = vmatprep.subr.mxu0 0.0
        %1642 = vmatpush1.msra.mxu0 0.0
        %1643 = vmatprep.subr.mxu0 0.0
        %1644 = vmatpush1.msra.mxu0 0.0
        %1645 = vmatprep.subr.mxu0 0.0
        %1646 = vmatpush1.msra.mxu0 0.0
        %1647 = vmatprep.subr.mxu0 0.0
        %1648 = vmatpush1.msra.mxu0 0.0
        %1649 = vmatprep.subr.mxu0 0.0
        %1650 = vmatpush1.msra.mxu0 0.0
        %1651 = vmatprep.subr.mxu0 0.0
        %1652 = vmatpush1.msra.mxu0 0.0
        %1653 = vmatprep.subr.mxu0 0.0
        %1654 = vmatpush1.msra.mxu0 0.0
        %1655 = vmatprep.subr.mxu0 0.0
        %1656 = vmatpush1.msra.mxu0 0.0
        %1657 = vmatprep.subr.mxu0 0.0
        %1658 = vmatpush1.msra.mxu0 0.0
        %1659 = vmatprep.subr.mxu0 0.0
        %1660 = vmatpush1.msra.mxu0 0.0
        %1661 = vmatprep.subr.mxu0 0.0
        %1662 = vmatpush1.msra.mxu0 0.0
        %1663 = vmatprep.subr.mxu0 0.0
        %1664 = vmatpush1.msra.mxu0 0.0
        %1665 = vmatprep.subr.mxu0 0.0
        %1666 = vmatpush1.msra.mxu0 0.0
        %1667 = vmatprep.subr.mxu0 0.0
        %1668 = vmatpush1.msra.mxu0 0.0
        %1669 = vmatprep.subr.mxu0 0.0
        %1670 = vmatpush1.msra.mxu0 0.0
        %1671 = vmatprep.subr.mxu0 0.0
        %1672 = vmatpush1.msra.mxu0 0.0
        %1673 = vmatprep.subr.mxu0 0.0
        %1674 = vmatpush1.msra.mxu0 0.0
        %1675 = vmatprep.subr.mxu0 0.0
        %1676 = vmatpush1.msra.mxu0 0.0
        %1677 = vmatprep.subr.mxu0 0.0
        %1678 = vmatpush1.msra.mxu0 0.0
        %1679 = vmatprep.subr.mxu0 0.0
        %1680 = vmatpush1.msra.mxu0 0.0
        %1681 = vmatprep.mubr.f32.mxu0 0.0
        %1682 = vmatmul.mubr.f32.gmra.mrb[0].mxu0 %v1538
        %v1683 = vpop.f32.mrb[0].mxu0
        %v1684 = vadd.f32 0.0, %v1683
        %v1685 = vpop.f32.mrb[0].mxu0
        %1686 = vdwg.mxu0
        %v1687 = vadd.f32 %v1514, %v1613
        %v1688 = vadd.f32 %v1515, %v1615
        %v1689 = vadd.f32 %v1516, %v1684
        %v1690 = vld [vmem:[%s2] sm:$0xf]
        %1692 = vset.pattern.permute.xlu0 0
        %1693 = vperm.xlu0 %1692, %v1690
        %v1694 = vpop.permute.xlu0 %1693
        %v1696 = vadd.f32 %v1687, %v1694
        %v1697 = vadd.f32 %v1688, %v1694
        %v1698 = vadd.f32 %v1689, %v1694
        %v1701 = vcombine.low %v1696, %v1697
        %1703 = vst [vmem:[%s188] sm:$0xff] %v1701
        %1704 = vst [vmem:[%s188 + $0x8] sm:$0xf] %v1698
        %s1705 = sand.u32 %s96, 1
        %s1706 = scalar_lea.sflag [#allocation4], %s1705
        %s1707 = sand.u32 %s96, 1
        %s1708 = smul.addr %s1707, 12
        %s1709 = scalar_lea.vmem [#allocation5], %s1708
        // Predicated region
        $region37: #{tpu_custom_call.1} parent=31 // pred_check
          %p1710 = pneg %p106
        $region38: #{tpu_custom_call.1} parent=31 // pred_check_branch
          %1712 = sbr.rel (%p1710) target = $region40
        $region39: #{tpu_custom_call.1} parent=31 // pred_region
          %s1714 = ssub.s32 192, 192
          %1715 = vsyncadd %s1706, %s1714
          %s1716 = smul.addr %s20, 3
          %s1717 = smul.addr %s1716, 64
          %s1718 = scalar_lea.hbm %s3, %s1717
          %s1720 = sshll.u32 %s1709, 4
          %s1721 = int_to_ptr.vmem [resolvable:$true] %s1720
          %1723 = dma.vmem_to_hbm [thread:$0]  %s1721, 192, %s1718, %s1706
        $region40: #{tpu_custom_call.1} parent=31 // pred_fallthru
          _
      $region32: #{tpu_custom_call.1} parent=5 // pred_fallthru
        _
      %p1724 = scmp.le.s32.totalorder 2, %s15
      // Predicated region
      $region41: #{tpu_custom_call.1} parent=5 // pred_check
        %p1725 = pneg %p1724
      $region42: #{tpu_custom_call.1} parent=5 // pred_check_branch
        %1727 = sbr.rel (%p1725) target = $region44
      $region43: #{tpu_custom_call.1} parent=5 // pred_region
        %s1728 = ssub.s32 %s15, 2
        // Predicated region
        $region45: #{tpu_custom_call.1} parent=43 // pred_check
          %p1729 = pneg %p112
        $region46: #{tpu_custom_call.1} parent=43 // pred_check_branch
          %1731 = sbr.rel (%p1729) target = $region48
        $region47: #{tpu_custom_call.1} parent=43 // pred_region
          %s1732 = sand.u32 %s97, 1
          %s1733 = scalar_lea.sflag [#allocation4], %s1732
          %s1734 = sand.u32 %s97, 1
          %s1735 = smul.addr %s1734, 12
          %s1736 = scalar_lea.vmem [#allocation5], %s1735
          %1737 = dma.done %s1733, 192
        $region48: #{tpu_custom_call.1} parent=43 // pred_fallthru
          _
      $region44: #{tpu_custom_call.1} parent=5 // pred_fallthru
        _
    $region6: #{tpu_custom_call.1} parent=1 // loop_footer
      %s19 = sadd.s32 1, %s15
    $region7: #{tpu_custom_call.1} parent=1 // loop_footer_branch
      %14 = sbr.rel target = $region3
    $region8: #{tpu_custom_call.1} parent=1 // loop_exit
      _
    %1738 = vsyncpa [#allocation3], 1
    %s1739 = scalar_lea.sflag [#allocation3], 1
    %1740 = vsyncpa %s1739, 1
    %1741 = vsyncpa [#allocation4], 1
    %s1742 = scalar_lea.sflag [#allocation4], 1
    %1743 = vsyncpa %s1742, 1

</llo_original>
